<compile_context>
chip_gen: v5e
topology: v5e:2x2
jax: 0.10.0
libtpu: 0.0.40
codegen_flags: <defaults>
</compile_context>

<pallas_src>
import functools
import math

import jax
import jax.numpy as jnp
from jax import lax
from jax.experimental import pallas as pl
from jax.experimental.pallas import tpu as pltpu


# ----------------------------------------------------------------------------
# Fused Pallas kernel: embedding + bidirectional GRU + mean + fc
# ----------------------------------------------------------------------------
def gru_net_kernel(ids2_ref,                      # (T*B, 2) int32: [fwd id, bwd id + C]
                   table_ref,                     # (2C, 6H) bf16 fused gate table
                   wh_ref,                        # (2H, 6H) bf16 block-diag recurrent W
                   bhn_ref,                       # (1, 2H)  f32  [bhn_f | bhn_b]
                   fcw_ref, fcb_ref,              # (H, O) bf16, (1, O) f32
                   out_ref,                       # (1, B, O)  f32
                   hall_ref,                      # (B, T*2H)  f32 (lane-dense)
                   hlast_ref,                     # (2, B, H)  f32
                   *, batch, seq_len, hidden):
    B, T, H = batch, seq_len, hidden
    H2, H4, H6 = 2 * H, 4 * H, 6 * H
    C2 = table_ref.shape[0]
    f32, bf16 = jnp.float32, jnp.bfloat16

    # ---- Prologue: embedding + input projections as ONE one-hot matmul -----
    # Row r = t*B + b has two 1s: fwd id (time t) and bwd id (time T-1-t) + C.
    # Gate columns: [r_f r_b | z_f z_b | n_f n_b]; r/z biases already folded.
    ids2 = ids2_ref[...]                                             # (T*B, 2)
    iota = lax.broadcasted_iota(jnp.int32, (T * B, C2), 1)
    onehot = ((iota == ids2[:, 0:1]) | (iota == ids2[:, 1:2])).astype(bf16)
    gi_all = jnp.dot(onehot, table_ref[...],
                     preferred_element_type=f32)                     # (T*B, 6H)

    wh = wh_ref[...]                                                 # (2H, 6H)
    bhn = jnp.broadcast_to(bhn_ref[...], (B, H2))                    # hoisted

    # ---- Fully unrolled fused fwd+bwd recurrence ---------------------------
    h = jnp.zeros((B, H2), f32)                                      # [h_f | h_b]
    for s in range(T):
        gi = gi_all[s * B:(s + 1) * B, :]                            # (B, 6H)
        gh = jnp.dot(h.astype(bf16), wh, preferred_element_type=f32) # (B, 6H)
        rz = jax.nn.sigmoid(gi[:, 0:H4] + gh[:, 0:H4])               # 4H lanes
        r = rz[:, 0:H2]
        z = rz[:, H2:H4]
        n = jnp.tanh(gi[:, H4:H6] + r * (gh[:, H4:H6] + bhn))        # 2H lanes
        h = (1.0 - z) * n + z * h

        # h_all writes (lane-dense): fwd half at time s, bwd half at time T-1-s
        tb = T - 1 - s
        hall_ref[:, s * H2:s * H2 + H] = h[:, 0:H]
        hall_ref[:, tb * H2 + H:(tb + 1) * H2] = h[:, H:H2]

    # ---- h_last (PyTorch convention) + mean over directions + fc -----------
    hlast_ref[0] = h[:, 0:H]
    hlast_ref[1] = h[:, H:H2]
    h_mean = (h[:, 0:H] + h[:, H:H2]) * 0.5
    out_ref[0] = (jnp.dot(h_mean.astype(bf16), fcw_ref[...],
                          preferred_element_type=f32) + fcb_ref[...])


# ----------------------------------------------------------------------------
# Wrapper
# ----------------------------------------------------------------------------
_VMEM = pl.BlockSpec(memory_space=pltpu.MemorySpace.VMEM)


@jax.jit
def gru_net_forward(x_idx, fused):
    """Full GRU_Net forward (if_gru=True). Returns (out, h_all, h_last)."""
    B, T = x_idx.shape
    H2 = fused["wh"].shape[0]
    H = H2 // 2
    O = fused["fc_w"].shape[1]
    C = fused["table"].shape[0] // 2

    # Pad batch to one sublane tile so all per-step slices are tile-aligned.
    Bp = max(8, -(-B // 8) * 8)
    xp = jnp.pad(x_idx.astype(jnp.int32), ((0, Bp - B), (0, 0)))     # (Bp, T)
    ids_f = xp.T                                                     # (T, Bp) time-major
    ids_b = ids_f[::-1] + C                                          # reversed time, +C
    ids2 = jnp.stack([ids_f.reshape(T * Bp), ids_b.reshape(T * Bp)], axis=1)

    kernel = functools.partial(gru_net_kernel, batch=Bp, seq_len=T, hidden=H)
    out, hall_flat, h_last = pl.pallas_call(
        kernel,
        out_shape=(
            jax.ShapeDtypeStruct((1, Bp, O), jnp.float32),           # fc output
            jax.ShapeDtypeStruct((Bp, T * 2 * H), jnp.float32),      # h_all, lane-dense
            jax.ShapeDtypeStruct((2, Bp, H), jnp.float32),           # h_last
        ),
        in_specs=[_VMEM] * 6,
        out_specs=(_VMEM, _VMEM, _VMEM),
    )(ids2, fused["table"], fused["wh"], fused["bhn"],
      fused["fc_w"], fused["fc_b"])

    out = out[:, :B, :]
    h_all = hall_flat[:B].reshape(B, T, 2 * H)                       # metadata-only
    h_last = h_last[:, :B, :]
    return out, h_all, h_last


# ----------------------------------------------------------------------------
# Parameter construction (matches nn.GRU / nn.Linear shapes) + host-side fusion
# ----------------------------------------------------------------------------
def init_params(key, c_number, input_size, hidden_size, output_size):
    stdv = 1.0 / math.sqrt(hidden_size)
    keys = jax.random.split(key, 32)
    ki = iter(keys)

    def unif(shape):
        return jax.random.uniform(next(ki), shape, jnp.float32, -stdv, stdv)

    def direction_params():
        return {
            # stored transposed for right-multiplication: (in_dim, hidden)
            "wir": unif((input_size, hidden_size)),
            "wiz": unif((input_size, hidden_size)),
            "win": unif((input_size, hidden_size)),
            "whr": unif((hidden_size, hidden_size)),
            "whz": unif((hidden_size, hidden_size)),
            "whn": unif((hidden_size, hidden_size)),
            "bir": unif((1, hidden_size)),
            "biz": unif((1, hidden_size)),
            "bin": unif((1, hidden_size)),
            "bhr": unif((1, hidden_size)),
            "bhz": unif((1, hidden_size)),
            "bhn": unif((1, hidden_size)),
        }

    return {
        "embedding": jax.random.normal(next(ki), (c_number, input_size),
                                       jnp.float32),
        "fwd": direction_params(),
        "bwd": direction_params(),
        "fc_w_t": unif((hidden_size, output_size)),  # Linear weight, transposed
        "fc_b": unif((1, output_size)),
    }


def _gate_tables(emb, d):
    """(C, H) per-gate input tables (emb @ W_i with r/z hidden biases folded),
    bf16-quantized — the exact quantization point the kernel sees."""
    hi = lax.Precision.HIGHEST
    tr = jnp.dot(emb, d["wir"], precision=hi) + d["bir"] + d["bhr"]
    tz = jnp.dot(emb, d["wiz"], precision=hi) + d["biz"] + d["bhz"]
    tn = jnp.dot(emb, d["win"], precision=hi) + d["bin"]
    q = lambda a: a.astype(jnp.bfloat16)
    return q(tr), q(tz), q(tn)


def fuse_params(params):
    """One-time host-side fusion: embedding folded into a (2C, 6H) gate table,
    block-diagonal recurrent weight, concatenated biases, bf16 matmul operands."""
    emb = params["embedding"]
    C = emb.shape[0]
    H = params["fwd"]["whr"].shape[0]
    f32, bf16 = jnp.float32, jnp.bfloat16
    fw, bw = params["fwd"], params["bwd"]

    tr_f, tz_f, tn_f = _gate_tables(emb, fw)
    tr_b, tz_b, tn_b = _gate_tables(emb, bw)
    zc = jnp.zeros((C, H), bf16)
    # Column order: [r_f r_b | z_f z_b | n_f n_b]
    table = jnp.concatenate([
        jnp.concatenate([tr_f, zc, tz_f, zc, tn_f, zc], axis=1),   # rows 0:C  (fwd ids)
        jnp.concatenate([zc, tr_b, zc, tz_b, zc, tn_b], axis=1),   # rows C:2C (bwd ids)
    ], axis=0)                                                     # (2C, 6H) bf16

    zh = jnp.zeros((H, H), f32)
    wh = jnp.concatenate([
        jnp.concatenate([fw["whr"], zh, fw["whz"], zh, fw["whn"], zh], axis=1),
        jnp.concatenate([zh, bw["whr"], zh, bw["whz"], zh, bw["whn"]], axis=1),
    ], axis=0).astype(bf16)                                        # (2H, 6H) bf16

    bhn = jnp.concatenate([fw["bhn"], bw["bhn"]], axis=1)          # (1, 2H) f32

    return {"table": table, "wh": wh, "bhn": bhn,
            "fc_w": params["fc_w_t"].astype(bf16), "fc_b": params["fc_b"]}


# ----------------------------------------------------------------------------
# Pure-JAX reference (separate per-direction, gather-based; same quantization
# points as the kernel, but independently checks the block-diag fusion, gate
# ordering, one-hot/2C trick and time indexing).
# ----------------------------------------------------------------------------
@jax.jit
def gru_net_reference(x_idx, params):
    f32, bf16 = jnp.float32, jnp.bfloat16
    emb = params["embedding"]
    B, T = x_idx.shape
    H = params["fwd"]["whr"].shape[0]

    def run_dir(d, times):
        tr, tz, tn = _gate_tables(emb, d)
        tr, tz, tn = tr.astype(f32), tz.astype(f32), tn.astype(f32)
        whr = d["whr"].astype(bf16)
        whz = d["whz"].astype(bf16)
        whn = d["whn"].astype(bf16)
        h = jnp.zeros((B, H), f32)
        outs = [None] * T
        for t in times:
            ids_t = x_idx[:, t]
            hb = h.astype(bf16)
            gh_r = jnp.dot(hb, whr, preferred_element_type=f32)
            gh_z = jnp.dot(hb, whz, preferred_element_type=f32)
            gh_n = jnp.dot(hb, whn, preferred_element_type=f32) + d["bhn"]
            r = jax.nn.sigmoid(tr[ids_t] + gh_r)
            z = jax.nn.sigmoid(tz[ids_t] + gh_z)
            n = jnp.tanh(tn[ids_t] + r * gh_n)
            h = (1.0 - z) * n + z * h
            outs[t] = h
        return outs, h

    fwd_outs, h_f = run_dir(params["fwd"], list(range(T)))
    bwd_outs, h_b = run_dir(params["bwd"], list(range(T - 1, -1, -1)))
    h_all = jnp.concatenate([jnp.stack(fwd_outs, axis=1),
                             jnp.stack(bwd_outs, axis=1)], axis=-1)
    h_last = jnp.stack([h_f, h_b], axis=0)
    h_mean = (h_f + h_b) * 0.5
    out = (jnp.dot(h_mean.astype(bf16), params["fc_w_t"].astype(bf16),
                   preferred_element_type=f32) + params["fc_b"])[None]
    return out, h_all, h_last


# ----------------------------------------------------------------------------
if __name__ == "__main__":
    c_number = 20        # vocab size for the Embedding
    input_size = 16      # embedding dim / GRU input size
    hidden_size = 32     # GRU hidden size
    output_size = 8      # fc output size
    batch, seq_len = 4, 8

    key = jax.random.PRNGKey(0)
    k_params, k_data = jax.random.split(key)
    params = init_params(k_params, c_number, input_size, hidden_size,
                         output_size)
    fused = fuse_params(params)

    x_idx = jax.random.randint(k_data, (batch, seq_len), 0, c_number,
                               dtype=jnp.int32)

    out, h_all, h_last = gru_net_forward(x_idx, fused)
    jax.block_until_ready((out, h_all, h_last))

    assert out.shape == (1, batch, output_size)
    assert h_all.shape == (batch, seq_len, 2 * hidden_size)
    assert h_last.shape == (2, batch, hidden_size)

    # Numerical check against a pure-JAX reference with identical quantization.
    out_r, hall_r, hlast_r = gru_net_reference(x_idx, params)
    assert jnp.allclose(out, out_r, atol=5e-3, rtol=5e-3)
    assert jnp.allclose(h_all, hall_r, atol=5e-3, rtol=5e-3)
    assert jnp.allclose(h_last, hlast_r, atol=5e-3, rtol=5e-3)

    print("KERNEL_OK")
</pallas_src>

<mosaic_0001>
module attributes {stable_mosaic.version = 11 : i64} {
  func.func @gru_net_kernel(%arg0: memref<64x2xi32, #tpu.memory_space<vmem>>, %arg1: memref<40x192xbf16, #tpu.memory_space<vmem>>, %arg2: memref<64x192xbf16, #tpu.memory_space<vmem>>, %arg3: memref<1x64xf32, #tpu.memory_space<vmem>>, %arg4: memref<32x8xbf16, #tpu.memory_space<vmem>>, %arg5: memref<1x8xf32, #tpu.memory_space<vmem>>, %arg6: memref<1x8x8xf32, #tpu.memory_space<vmem>>, %arg7: memref<8x512xf32, #tpu.memory_space<vmem>>, %arg8: memref<2x8x32xf32, #tpu.memory_space<vmem>>) attributes {dimension_semantics = [], scalar_prefetch = 0 : i64, scratch_operands = 0 : i64, tpu.core_type = #tpu.core_type<tc>} {
    %c0 = arith.constant 0 : index
    %c0_0 = arith.constant 0 : index
    %0 = vector.load %arg0[%c0, %c0_0] : memref<64x2xi32, #tpu.memory_space<vmem>>, vector<64x2xi32>
    %1 = tpu.iota {dimensions = array<i32: 1>} : vector<64x40xi32>
    %2 = vector.extract_strided_slice %0 {offsets = [0, 0], sizes = [64, 1], strides = [1, 1]} : vector<64x2xi32> to vector<64x1xi32>
    %3 = vector.broadcast %2 : vector<64x1xi32> to vector<64x40xi32>
    %4 = arith.cmpi eq, %1, %3 : vector<64x40xi32>
    %5 = vector.extract_strided_slice %0 {offsets = [0, 1], sizes = [64, 1], strides = [1, 1]} : vector<64x2xi32> to vector<64x1xi32>
    %6 = vector.broadcast %5 : vector<64x1xi32> to vector<64x40xi32>
    %7 = arith.cmpi eq, %1, %6 : vector<64x40xi32>
    %8 = arith.ori %4, %7 : vector<64x40xi1>
    %9 = arith.extui %8 : vector<64x40xi1> to vector<64x40xi32>
    %10 = arith.sitofp %9 : vector<64x40xi32> to vector<64x40xf32>
    %11 = arith.truncf %10 : vector<64x40xf32> to vector<64x40xbf16>
    %c0_1 = arith.constant 0 : index
    %c0_2 = arith.constant 0 : index
    %12 = vector.load %arg1[%c0_1, %c0_2] : memref<40x192xbf16, #tpu.memory_space<vmem>>, vector<40x192xbf16>
    %cst = arith.constant dense<0.000000e+00> : vector<64x192xf32>
    %13 = tpu.matmul %11, %12, %cst {dimension_numbers = #tpu.dot_dimension_numbers<[1], [0], [0], [1], [0, 0, 1, 1], [], []>} : vector<64x40xbf16>, vector<40x192xbf16>, vector<64x192xf32> -> vector<64x192xf32>
    %c0_3 = arith.constant 0 : index
    %c0_4 = arith.constant 0 : index
    %14 = vector.load %arg2[%c0_3, %c0_4] : memref<64x192xbf16, #tpu.memory_space<vmem>>, vector<64x192xbf16>
    %c0_5 = arith.constant 0 : index
    %c0_6 = arith.constant 0 : index
    %15 = vector.load %arg3[%c0_5, %c0_6] : memref<1x64xf32, #tpu.memory_space<vmem>>, vector<1x64xf32>
    %16 = vector.shape_cast %15 : vector<1x64xf32> to vector<1x64xf32>
    %17 = vector.broadcast %16 : vector<1x64xf32> to vector<8x64xf32>
    %cst_7 = arith.constant 0.000000e+00 : f32
    %18 = vector.broadcast %cst_7 : f32 to vector<8x64xf32>
    %19 = vector.extract_strided_slice %13 {offsets = [0, 0], sizes = [8, 192], strides = [1, 1]} : vector<64x192xf32> to vector<8x192xf32>
    %20 = arith.truncf %18 : vector<8x64xf32> to vector<8x64xbf16>
    %cst_8 = arith.constant dense<0.000000e+00> : vector<8x192xf32>
    %21 = tpu.matmul %20, %14, %cst_8 {dimension_numbers = #tpu.dot_dimension_numbers<[1], [0], [0], [1], [0, 0, 1, 1], [], []>} : vector<8x64xbf16>, vector<64x192xbf16>, vector<8x192xf32> -> vector<8x192xf32>
    %22 = vector.extract_strided_slice %19 {offsets = [0, 0], sizes = [8, 128], strides = [1, 1]} : vector<8x192xf32> to vector<8x128xf32>
    %23 = vector.extract_strided_slice %21 {offsets = [0, 0], sizes = [8, 128], strides = [1, 1]} : vector<8x192xf32> to vector<8x128xf32>
    %24 = arith.addf %22, %23 : vector<8x128xf32>
    %25 = arith.negf %24 : vector<8x128xf32>
    %26 = math.exp %25 : vector<8x128xf32>
    %cst_9 = arith.constant 1.000000e+00 : f32
    %27 = vector.broadcast %cst_9 : f32 to vector<8x128xf32>
    %28 = arith.addf %27, %26 : vector<8x128xf32>
    %29 = arith.divf %27, %28 : vector<8x128xf32>
    %30 = vector.extract_strided_slice %29 {offsets = [0, 0], sizes = [8, 64], strides = [1, 1]} : vector<8x128xf32> to vector<8x64xf32>
    %31 = vector.extract_strided_slice %29 {offsets = [0, 64], sizes = [8, 64], strides = [1, 1]} : vector<8x128xf32> to vector<8x64xf32>
    %32 = vector.extract_strided_slice %19 {offsets = [0, 128], sizes = [8, 64], strides = [1, 1]} : vector<8x192xf32> to vector<8x64xf32>
    %33 = vector.extract_strided_slice %21 {offsets = [0, 128], sizes = [8, 64], strides = [1, 1]} : vector<8x192xf32> to vector<8x64xf32>
    %34 = arith.addf %33, %17 : vector<8x64xf32>
    %35 = arith.mulf %30, %34 : vector<8x64xf32>
    %36 = arith.addf %32, %35 : vector<8x64xf32>
    %37 = math.tanh %36 : vector<8x64xf32>
    %cst_10 = arith.constant 1.000000e+00 : f32
    %38 = vector.broadcast %cst_10 : f32 to vector<8x64xf32>
    %39 = arith.subf %38, %31 : vector<8x64xf32>
    %40 = arith.mulf %39, %37 : vector<8x64xf32>
    %41 = arith.mulf %31, %18 : vector<8x64xf32>
    %42 = arith.addf %40, %41 : vector<8x64xf32>
    %43 = vector.extract_strided_slice %42 {offsets = [0, 0], sizes = [8, 32], strides = [1, 1]} : vector<8x64xf32> to vector<8x32xf32>
    %c0_11 = arith.constant 0 : index
    %c0_12 = arith.constant 0 : index
    %44 = vector.load %arg7[%c0_11, %c0_12] : memref<8x512xf32, #tpu.memory_space<vmem>>, vector<8x32xf32>
    tpu.vector_store %arg7[%c0_11, %c0_12], %43 {strides = array<i32>} : memref<8x512xf32, #tpu.memory_space<vmem>>, vector<8x32xf32>,
    %45 = vector.extract_strided_slice %42 {offsets = [0, 32], sizes = [8, 32], strides = [1, 1]} : vector<8x64xf32> to vector<8x32xf32>
    %c0_13 = arith.constant 0 : index
    %c480 = arith.constant 480 : index
    %46 = vector.load %arg7[%c0_13, %c480] : memref<8x512xf32, #tpu.memory_space<vmem>>, vector<8x32xf32>
    tpu.vector_store %arg7[%c0_13, %c480], %45 {strides = array<i32>} : memref<8x512xf32, #tpu.memory_space<vmem>>, vector<8x32xf32>,
    %47 = vector.extract_strided_slice %13 {offsets = [8, 0], sizes = [8, 192], strides = [1, 1]} : vector<64x192xf32> to vector<8x192xf32>
    %48 = arith.truncf %42 : vector<8x64xf32> to vector<8x64xbf16>
    %cst_14 = arith.constant dense<0.000000e+00> : vector<8x192xf32>
    %49 = tpu.matmul %48, %14, %cst_14 {dimension_numbers = #tpu.dot_dimension_numbers<[1], [0], [0], [1], [0, 0, 1, 1], [], []>} : vector<8x64xbf16>, vector<64x192xbf16>, vector<8x192xf32> -> vector<8x192xf32>
    %50 = vector.extract_strided_slice %47 {offsets = [0, 0], sizes = [8, 128], strides = [1, 1]} : vector<8x192xf32> to vector<8x128xf32>
    %51 = vector.extract_strided_slice %49 {offsets = [0, 0], sizes = [8, 128], strides = [1, 1]} : vector<8x192xf32> to vector<8x128xf32>
    %52 = arith.addf %50, %51 : vector<8x128xf32>
    %53 = arith.negf %52 : vector<8x128xf32>
    %54 = math.exp %53 : vector<8x128xf32>
    %cst_15 = arith.constant 1.000000e+00 : f32
    %55 = vector.broadcast %cst_15 : f32 to vector<8x128xf32>
    %56 = arith.addf %55, %54 : vector<8x128xf32>
    %57 = arith.divf %55, %56 : vector<8x128xf32>
    %58 = vector.extract_strided_slice %57 {offsets = [0, 0], sizes = [8, 64], strides = [1, 1]} : vector<8x128xf32> to vector<8x64xf32>
    %59 = vector.extract_strided_slice %57 {offsets = [0, 64], sizes = [8, 64], strides = [1, 1]} : vector<8x128xf32> to vector<8x64xf32>
    %60 = vector.extract_strided_slice %47 {offsets = [0, 128], sizes = [8, 64], strides = [1, 1]} : vector<8x192xf32> to vector<8x64xf32>
    %61 = vector.extract_strided_slice %49 {offsets = [0, 128], sizes = [8, 64], strides = [1, 1]} : vector<8x192xf32> to vector<8x64xf32>
    %62 = arith.addf %61, %17 : vector<8x64xf32>
    %63 = arith.mulf %58, %62 : vector<8x64xf32>
    %64 = arith.addf %60, %63 : vector<8x64xf32>
    %65 = math.tanh %64 : vector<8x64xf32>
    %cst_16 = arith.constant 1.000000e+00 : f32
    %66 = vector.broadcast %cst_16 : f32 to vector<8x64xf32>
    %67 = arith.subf %66, %59 : vector<8x64xf32>
    %68 = arith.mulf %67, %65 : vector<8x64xf32>
    %69 = arith.mulf %59, %42 : vector<8x64xf32>
    %70 = arith.addf %68, %69 : vector<8x64xf32>
    %71 = vector.extract_strided_slice %70 {offsets = [0, 0], sizes = [8, 32], strides = [1, 1]} : vector<8x64xf32> to vector<8x32xf32>
    %c0_17 = arith.constant 0 : index
    %c64 = arith.constant 64 : index
    %72 = vector.load %arg7[%c0_17, %c64] : memref<8x512xf32, #tpu.memory_space<vmem>>, vector<8x32xf32>
    tpu.vector_store %arg7[%c0_17, %c64], %71 {strides = array<i32>} : memref<8x512xf32, #tpu.memory_space<vmem>>, vector<8x32xf32>,
    %73 = vector.extract_strided_slice %70 {offsets = [0, 32], sizes = [8, 32], strides = [1, 1]} : vector<8x64xf32> to vector<8x32xf32>
    %c0_18 = arith.constant 0 : index
    %c416 = arith.constant 416 : index
    %74 = vector.load %arg7[%c0_18, %c416] : memref<8x512xf32, #tpu.memory_space<vmem>>, vector<8x32xf32>
    tpu.vector_store %arg7[%c0_18, %c416], %73 {strides = array<i32>} : memref<8x512xf32, #tpu.memory_space<vmem>>, vector<8x32xf32>,
    %75 = vector.extract_strided_slice %13 {offsets = [16, 0], sizes = [8, 192], strides = [1, 1]} : vector<64x192xf32> to vector<8x192xf32>
    %76 = arith.truncf %70 : vector<8x64xf32> to vector<8x64xbf16>
    %cst_19 = arith.constant dense<0.000000e+00> : vector<8x192xf32>
    %77 = tpu.matmul %76, %14, %cst_19 {dimension_numbers = #tpu.dot_dimension_numbers<[1], [0], [0], [1], [0, 0, 1, 1], [], []>} : vector<8x64xbf16>, vector<64x192xbf16>, vector<8x192xf32> -> vector<8x192xf32>
    %78 = vector.extract_strided_slice %75 {offsets = [0, 0], sizes = [8, 128], strides = [1, 1]} : vector<8x192xf32> to vector<8x128xf32>
    %79 = vector.extract_strided_slice %77 {offsets = [0, 0], sizes = [8, 128], strides = [1, 1]} : vector<8x192xf32> to vector<8x128xf32>
    %80 = arith.addf %78, %79 : vector<8x128xf32>
    %81 = arith.negf %80 : vector<8x128xf32>
    %82 = math.exp %81 : vector<8x128xf32>
    %cst_20 = arith.constant 1.000000e+00 : f32
    %83 = vector.broadcast %cst_20 : f32 to vector<8x128xf32>
    %84 = arith.addf %83, %82 : vector<8x128xf32>
    %85 = arith.divf %83, %84 : vector<8x128xf32>
    %86 = vector.extract_strided_slice %85 {offsets = [0, 0], sizes = [8, 64], strides = [1, 1]} : vector<8x128xf32> to vector<8x64xf32>
    %87 = vector.extract_strided_slice %85 {offsets = [0, 64], sizes = [8, 64], strides = [1, 1]} : vector<8x128xf32> to vector<8x64xf32>
    %88 = vector.extract_strided_slice %75 {offsets = [0, 128], sizes = [8, 64], strides = [1, 1]} : vector<8x192xf32> to vector<8x64xf32>
    %89 = vector.extract_strided_slice %77 {offsets = [0, 128], sizes = [8, 64], strides = [1, 1]} : vector<8x192xf32> to vector<8x64xf32>
    %90 = arith.addf %89, %17 : vector<8x64xf32>
    %91 = arith.mulf %86, %90 : vector<8x64xf32>
    %92 = arith.addf %88, %91 : vector<8x64xf32>
    %93 = math.tanh %92 : vector<8x64xf32>
    %cst_21 = arith.constant 1.000000e+00 : f32
    %94 = vector.broadcast %cst_21 : f32 to vector<8x64xf32>
    %95 = arith.subf %94, %87 : vector<8x64xf32>
    %96 = arith.mulf %95, %93 : vector<8x64xf32>
    %97 = arith.mulf %87, %70 : vector<8x64xf32>
    %98 = arith.addf %96, %97 : vector<8x64xf32>
    %99 = vector.extract_strided_slice %98 {offsets = [0, 0], sizes = [8, 32], strides = [1, 1]} : vector<8x64xf32> to vector<8x32xf32>
    %c0_22 = arith.constant 0 : index
    %c128 = arith.constant 128 : index
    %100 = vector.load %arg7[%c0_22, %c128] : memref<8x512xf32, #tpu.memory_space<vmem>>, vector<8x32xf32>
    tpu.vector_store %arg7[%c0_22, %c128], %99 {strides = array<i32>} : memref<8x512xf32, #tpu.memory_space<vmem>>, vector<8x32xf32>,
    %101 = vector.extract_strided_slice %98 {offsets = [0, 32], sizes = [8, 32], strides = [1, 1]} : vector<8x64xf32> to vector<8x32xf32>
    %c0_23 = arith.constant 0 : index
    %c352 = arith.constant 352 : index
    %102 = vector.load %arg7[%c0_23, %c352] : memref<8x512xf32, #tpu.memory_space<vmem>>, vector<8x32xf32>
    tpu.vector_store %arg7[%c0_23, %c352], %101 {strides = array<i32>} : memref<8x512xf32, #tpu.memory_space<vmem>>, vector<8x32xf32>,
    %103 = vector.extract_strided_slice %13 {offsets = [24, 0], sizes = [8, 192], strides = [1, 1]} : vector<64x192xf32> to vector<8x192xf32>
    %104 = arith.truncf %98 : vector<8x64xf32> to vector<8x64xbf16>
    %cst_24 = arith.constant dense<0.000000e+00> : vector<8x192xf32>
    %105 = tpu.matmul %104, %14, %cst_24 {dimension_numbers = #tpu.dot_dimension_numbers<[1], [0], [0], [1], [0, 0, 1, 1], [], []>} : vector<8x64xbf16>, vector<64x192xbf16>, vector<8x192xf32> -> vector<8x192xf32>
    %106 = vector.extract_strided_slice %103 {offsets = [0, 0], sizes = [8, 128], strides = [1, 1]} : vector<8x192xf32> to vector<8x128xf32>
    %107 = vector.extract_strided_slice %105 {offsets = [0, 0], sizes = [8, 128], strides = [1, 1]} : vector<8x192xf32> to vector<8x128xf32>
    %108 = arith.addf %106, %107 : vector<8x128xf32>
    %109 = arith.negf %108 : vector<8x128xf32>
    %110 = math.exp %109 : vector<8x128xf32>
    %cst_25 = arith.constant 1.000000e+00 : f32
    %111 = vector.broadcast %cst_25 : f32 to vector<8x128xf32>
    %112 = arith.addf %111, %110 : vector<8x128xf32>
    %113 = arith.divf %111, %112 : vector<8x128xf32>
    %114 = vector.extract_strided_slice %113 {offsets = [0, 0], sizes = [8, 64], strides = [1, 1]} : vector<8x128xf32> to vector<8x64xf32>
    %115 = vector.extract_strided_slice %113 {offsets = [0, 64], sizes = [8, 64], strides = [1, 1]} : vector<8x128xf32> to vector<8x64xf32>
    %116 = vector.extract_strided_slice %103 {offsets = [0, 128], sizes = [8, 64], strides = [1, 1]} : vector<8x192xf32> to vector<8x64xf32>
    %117 = vector.extract_strided_slice %105 {offsets = [0, 128], sizes = [8, 64], strides = [1, 1]} : vector<8x192xf32> to vector<8x64xf32>
    %118 = arith.addf %117, %17 : vector<8x64xf32>
    %119 = arith.mulf %114, %118 : vector<8x64xf32>
    %120 = arith.addf %116, %119 : vector<8x64xf32>
    %121 = math.tanh %120 : vector<8x64xf32>
    %cst_26 = arith.constant 1.000000e+00 : f32
    %122 = vector.broadcast %cst_26 : f32 to vector<8x64xf32>
    %123 = arith.subf %122, %115 : vector<8x64xf32>
    %124 = arith.mulf %123, %121 : vector<8x64xf32>
    %125 = arith.mulf %115, %98 : vector<8x64xf32>
    %126 = arith.addf %124, %125 : vector<8x64xf32>
    %127 = vector.extract_strided_slice %126 {offsets = [0, 0], sizes = [8, 32], strides = [1, 1]} : vector<8x64xf32> to vector<8x32xf32>
    %c0_27 = arith.constant 0 : index
    %c192 = arith.constant 192 : index
    %128 = vector.load %arg7[%c0_27, %c192] : memref<8x512xf32, #tpu.memory_space<vmem>>, vector<8x32xf32>
    tpu.vector_store %arg7[%c0_27, %c192], %127 {strides = array<i32>} : memref<8x512xf32, #tpu.memory_space<vmem>>, vector<8x32xf32>,
    %129 = vector.extract_strided_slice %126 {offsets = [0, 32], sizes = [8, 32], strides = [1, 1]} : vector<8x64xf32> to vector<8x32xf32>
    %c0_28 = arith.constant 0 : index
    %c288 = arith.constant 288 : index
    %130 = vector.load %arg7[%c0_28, %c288] : memref<8x512xf32, #tpu.memory_space<vmem>>, vector<8x32xf32>
    tpu.vector_store %arg7[%c0_28, %c288], %129 {strides = array<i32>} : memref<8x512xf32, #tpu.memory_space<vmem>>, vector<8x32xf32>,
    %131 = vector.extract_strided_slice %13 {offsets = [32, 0], sizes = [8, 192], strides = [1, 1]} : vector<64x192xf32> to vector<8x192xf32>
    %132 = arith.truncf %126 : vector<8x64xf32> to vector<8x64xbf16>
    %cst_29 = arith.constant dense<0.000000e+00> : vector<8x192xf32>
    %133 = tpu.matmul %132, %14, %cst_29 {dimension_numbers = #tpu.dot_dimension_numbers<[1], [0], [0], [1], [0, 0, 1, 1], [], []>} : vector<8x64xbf16>, vector<64x192xbf16>, vector<8x192xf32> -> vector<8x192xf32>
    %134 = vector.extract_strided_slice %131 {offsets = [0, 0], sizes = [8, 128], strides = [1, 1]} : vector<8x192xf32> to vector<8x128xf32>
    %135 = vector.extract_strided_slice %133 {offsets = [0, 0], sizes = [8, 128], strides = [1, 1]} : vector<8x192xf32> to vector<8x128xf32>
    %136 = arith.addf %134, %135 : vector<8x128xf32>
    %137 = arith.negf %136 : vector<8x128xf32>
    %138 = math.exp %137 : vector<8x128xf32>
    %cst_30 = arith.constant 1.000000e+00 : f32
    %139 = vector.broadcast %cst_30 : f32 to vector<8x128xf32>
    %140 = arith.addf %139, %138 : vector<8x128xf32>
    %141 = arith.divf %139, %140 : vector<8x128xf32>
    %142 = vector.extract_strided_slice %141 {offsets = [0, 0], sizes = [8, 64], strides = [1, 1]} : vector<8x128xf32> to vector<8x64xf32>
    %143 = vector.extract_strided_slice %141 {offsets = [0, 64], sizes = [8, 64], strides = [1, 1]} : vector<8x128xf32> to vector<8x64xf32>
    %144 = vector.extract_strided_slice %131 {offsets = [0, 128], sizes = [8, 64], strides = [1, 1]} : vector<8x192xf32> to vector<8x64xf32>
    %145 = vector.extract_strided_slice %133 {offsets = [0, 128], sizes = [8, 64], strides = [1, 1]} : vector<8x192xf32> to vector<8x64xf32>
    %146 = arith.addf %145, %17 : vector<8x64xf32>
    %147 = arith.mulf %142, %146 : vector<8x64xf32>
    %148 = arith.addf %144, %147 : vector<8x64xf32>
    %149 = math.tanh %148 : vector<8x64xf32>
    %cst_31 = arith.constant 1.000000e+00 : f32
    %150 = vector.broadcast %cst_31 : f32 to vector<8x64xf32>
    %151 = arith.subf %150, %143 : vector<8x64xf32>
    %152 = arith.mulf %151, %149 : vector<8x64xf32>
    %153 = arith.mulf %143, %126 : vector<8x64xf32>
    %154 = arith.addf %152, %153 : vector<8x64xf32>
    %155 = vector.extract_strided_slice %154 {offsets = [0, 0], sizes = [8, 32], strides = [1, 1]} : vector<8x64xf32> to vector<8x32xf32>
    %c0_32 = arith.constant 0 : index
    %c256 = arith.constant 256 : index
    %156 = vector.load %arg7[%c0_32, %c256] : memref<8x512xf32, #tpu.memory_space<vmem>>, vector<8x32xf32>
    tpu.vector_store %arg7[%c0_32, %c256], %155 {strides = array<i32>} : memref<8x512xf32, #tpu.memory_space<vmem>>, vector<8x32xf32>,
    %157 = vector.extract_strided_slice %154 {offsets = [0, 32], sizes = [8, 32], strides = [1, 1]} : vector<8x64xf32> to vector<8x32xf32>
    %c0_33 = arith.constant 0 : index
    %c224 = arith.constant 224 : index
    %158 = vector.load %arg7[%c0_33, %c224] : memref<8x512xf32, #tpu.memory_space<vmem>>, vector<8x32xf32>
    tpu.vector_store %arg7[%c0_33, %c224], %157 {strides = array<i32>} : memref<8x512xf32, #tpu.memory_space<vmem>>, vector<8x32xf32>,
    %159 = vector.extract_strided_slice %13 {offsets = [40, 0], sizes = [8, 192], strides = [1, 1]} : vector<64x192xf32> to vector<8x192xf32>
    %160 = arith.truncf %154 : vector<8x64xf32> to vector<8x64xbf16>
    %cst_34 = arith.constant dense<0.000000e+00> : vector<8x192xf32>
    %161 = tpu.matmul %160, %14, %cst_34 {dimension_numbers = #tpu.dot_dimension_numbers<[1], [0], [0], [1], [0, 0, 1, 1], [], []>} : vector<8x64xbf16>, vector<64x192xbf16>, vector<8x192xf32> -> vector<8x192xf32>
    %162 = vector.extract_strided_slice %159 {offsets = [0, 0], sizes = [8, 128], strides = [1, 1]} : vector<8x192xf32> to vector<8x128xf32>
    %163 = vector.extract_strided_slice %161 {offsets = [0, 0], sizes = [8, 128], strides = [1, 1]} : vector<8x192xf32> to vector<8x128xf32>
    %164 = arith.addf %162, %163 : vector<8x128xf32>
    %165 = arith.negf %164 : vector<8x128xf32>
    %166 = math.exp %165 : vector<8x128xf32>
    %cst_35 = arith.constant 1.000000e+00 : f32
    %167 = vector.broadcast %cst_35 : f32 to vector<8x128xf32>
    %168 = arith.addf %167, %166 : vector<8x128xf32>
    %169 = arith.divf %167, %168 : vector<8x128xf32>
    %170 = vector.extract_strided_slice %169 {offsets = [0, 0], sizes = [8, 64], strides = [1, 1]} : vector<8x128xf32> to vector<8x64xf32>
    %171 = vector.extract_strided_slice %169 {offsets = [0, 64], sizes = [8, 64], strides = [1, 1]} : vector<8x128xf32> to vector<8x64xf32>
    %172 = vector.extract_strided_slice %159 {offsets = [0, 128], sizes = [8, 64], strides = [1, 1]} : vector<8x192xf32> to vector<8x64xf32>
    %173 = vector.extract_strided_slice %161 {offsets = [0, 128], sizes = [8, 64], strides = [1, 1]} : vector<8x192xf32> to vector<8x64xf32>
    %174 = arith.addf %173, %17 : vector<8x64xf32>
    %175 = arith.mulf %170, %174 : vector<8x64xf32>
    %176 = arith.addf %172, %175 : vector<8x64xf32>
    %177 = math.tanh %176 : vector<8x64xf32>
    %cst_36 = arith.constant 1.000000e+00 : f32
    %178 = vector.broadcast %cst_36 : f32 to vector<8x64xf32>
    %179 = arith.subf %178, %171 : vector<8x64xf32>
    %180 = arith.mulf %179, %177 : vector<8x64xf32>
    %181 = arith.mulf %171, %154 : vector<8x64xf32>
    %182 = arith.addf %180, %181 : vector<8x64xf32>
    %183 = vector.extract_strided_slice %182 {offsets = [0, 0], sizes = [8, 32], strides = [1, 1]} : vector<8x64xf32> to vector<8x32xf32>
    %c0_37 = arith.constant 0 : index
    %c320 = arith.constant 320 : index
    %184 = vector.load %arg7[%c0_37, %c320] : memref<8x512xf32, #tpu.memory_space<vmem>>, vector<8x32xf32>
    tpu.vector_store %arg7[%c0_37, %c320], %183 {strides = array<i32>} : memref<8x512xf32, #tpu.memory_space<vmem>>, vector<8x32xf32>,
    %185 = vector.extract_strided_slice %182 {offsets = [0, 32], sizes = [8, 32], strides = [1, 1]} : vector<8x64xf32> to vector<8x32xf32>
    %c0_38 = arith.constant 0 : index
    %c160 = arith.constant 160 : index
    %186 = vector.load %arg7[%c0_38, %c160] : memref<8x512xf32, #tpu.memory_space<vmem>>, vector<8x32xf32>
    tpu.vector_store %arg7[%c0_38, %c160], %185 {strides = array<i32>} : memref<8x512xf32, #tpu.memory_space<vmem>>, vector<8x32xf32>,
    %187 = vector.extract_strided_slice %13 {offsets = [48, 0], sizes = [8, 192], strides = [1, 1]} : vector<64x192xf32> to vector<8x192xf32>
    %188 = arith.truncf %182 : vector<8x64xf32> to vector<8x64xbf16>
    %cst_39 = arith.constant dense<0.000000e+00> : vector<8x192xf32>
    %189 = tpu.matmul %188, %14, %cst_39 {dimension_numbers = #tpu.dot_dimension_numbers<[1], [0], [0], [1], [0, 0, 1, 1], [], []>} : vector<8x64xbf16>, vector<64x192xbf16>, vector<8x192xf32> -> vector<8x192xf32>
    %190 = vector.extract_strided_slice %187 {offsets = [0, 0], sizes = [8, 128], strides = [1, 1]} : vector<8x192xf32> to vector<8x128xf32>
    %191 = vector.extract_strided_slice %189 {offsets = [0, 0], sizes = [8, 128], strides = [1, 1]} : vector<8x192xf32> to vector<8x128xf32>
    %192 = arith.addf %190, %191 : vector<8x128xf32>
    %193 = arith.negf %192 : vector<8x128xf32>
    %194 = math.exp %193 : vector<8x128xf32>
    %cst_40 = arith.constant 1.000000e+00 : f32
    %195 = vector.broadcast %cst_40 : f32 to vector<8x128xf32>
    %196 = arith.addf %195, %194 : vector<8x128xf32>
    %197 = arith.divf %195, %196 : vector<8x128xf32>
    %198 = vector.extract_strided_slice %197 {offsets = [0, 0], sizes = [8, 64], strides = [1, 1]} : vector<8x128xf32> to vector<8x64xf32>
    %199 = vector.extract_strided_slice %197 {offsets = [0, 64], sizes = [8, 64], strides = [1, 1]} : vector<8x128xf32> to vector<8x64xf32>
    %200 = vector.extract_strided_slice %187 {offsets = [0, 128], sizes = [8, 64], strides = [1, 1]} : vector<8x192xf32> to vector<8x64xf32>
    %201 = vector.extract_strided_slice %189 {offsets = [0, 128], sizes = [8, 64], strides = [1, 1]} : vector<8x192xf32> to vector<8x64xf32>
    %202 = arith.addf %201, %17 : vector<8x64xf32>
    %203 = arith.mulf %198, %202 : vector<8x64xf32>
    %204 = arith.addf %200, %203 : vector<8x64xf32>
    %205 = math.tanh %204 : vector<8x64xf32>
    %cst_41 = arith.constant 1.000000e+00 : f32
    %206 = vector.broadcast %cst_41 : f32 to vector<8x64xf32>
    %207 = arith.subf %206, %199 : vector<8x64xf32>
    %208 = arith.mulf %207, %205 : vector<8x64xf32>
    %209 = arith.mulf %199, %182 : vector<8x64xf32>
    %210 = arith.addf %208, %209 : vector<8x64xf32>
    %211 = vector.extract_strided_slice %210 {offsets = [0, 0], sizes = [8, 32], strides = [1, 1]} : vector<8x64xf32> to vector<8x32xf32>
    %c0_42 = arith.constant 0 : index
    %c384 = arith.constant 384 : index
    %212 = vector.load %arg7[%c0_42, %c384] : memref<8x512xf32, #tpu.memory_space<vmem>>, vector<8x32xf32>
    tpu.vector_store %arg7[%c0_42, %c384], %211 {strides = array<i32>} : memref<8x512xf32, #tpu.memory_space<vmem>>, vector<8x32xf32>,
    %213 = vector.extract_strided_slice %210 {offsets = [0, 32], sizes = [8, 32], strides = [1, 1]} : vector<8x64xf32> to vector<8x32xf32>
    %c0_43 = arith.constant 0 : index
    %c96 = arith.constant 96 : index
    %214 = vector.load %arg7[%c0_43, %c96] : memref<8x512xf32, #tpu.memory_space<vmem>>, vector<8x32xf32>
    tpu.vector_store %arg7[%c0_43, %c96], %213 {strides = array<i32>} : memref<8x512xf32, #tpu.memory_space<vmem>>, vector<8x32xf32>,
    %215 = vector.extract_strided_slice %13 {offsets = [56, 0], sizes = [8, 192], strides = [1, 1]} : vector<64x192xf32> to vector<8x192xf32>
    %216 = arith.truncf %210 : vector<8x64xf32> to vector<8x64xbf16>
    %cst_44 = arith.constant dense<0.000000e+00> : vector<8x192xf32>
    %217 = tpu.matmul %216, %14, %cst_44 {dimension_numbers = #tpu.dot_dimension_numbers<[1], [0], [0], [1], [0, 0, 1, 1], [], []>} : vector<8x64xbf16>, vector<64x192xbf16>, vector<8x192xf32> -> vector<8x192xf32>
    %218 = vector.extract_strided_slice %215 {offsets = [0, 0], sizes = [8, 128], strides = [1, 1]} : vector<8x192xf32> to vector<8x128xf32>
    %219 = vector.extract_strided_slice %217 {offsets = [0, 0], sizes = [8, 128], strides = [1, 1]} : vector<8x192xf32> to vector<8x128xf32>
    %220 = arith.addf %218, %219 : vector<8x128xf32>
    %221 = arith.negf %220 : vector<8x128xf32>
    %222 = math.exp %221 : vector<8x128xf32>
    %cst_45 = arith.constant 1.000000e+00 : f32
    %223 = vector.broadcast %cst_45 : f32 to vector<8x128xf32>
    %224 = arith.addf %223, %222 : vector<8x128xf32>
    %225 = arith.divf %223, %224 : vector<8x128xf32>
    %226 = vector.extract_strided_slice %225 {offsets = [0, 0], sizes = [8, 64], strides = [1, 1]} : vector<8x128xf32> to vector<8x64xf32>
    %227 = vector.extract_strided_slice %225 {offsets = [0, 64], sizes = [8, 64], strides = [1, 1]} : vector<8x128xf32> to vector<8x64xf32>
    %228 = vector.extract_strided_slice %215 {offsets = [0, 128], sizes = [8, 64], strides = [1, 1]} : vector<8x192xf32> to vector<8x64xf32>
    %229 = vector.extract_strided_slice %217 {offsets = [0, 128], sizes = [8, 64], strides = [1, 1]} : vector<8x192xf32> to vector<8x64xf32>
    %230 = arith.addf %229, %17 : vector<8x64xf32>
    %231 = arith.mulf %226, %230 : vector<8x64xf32>
    %232 = arith.addf %228, %231 : vector<8x64xf32>
    %233 = math.tanh %232 : vector<8x64xf32>
    %cst_46 = arith.constant 1.000000e+00 : f32
    %234 = vector.broadcast %cst_46 : f32 to vector<8x64xf32>
    %235 = arith.subf %234, %227 : vector<8x64xf32>
    %236 = arith.mulf %235, %233 : vector<8x64xf32>
    %237 = arith.mulf %227, %210 : vector<8x64xf32>
    %238 = arith.addf %236, %237 : vector<8x64xf32>
    %239 = vector.extract_strided_slice %238 {offsets = [0, 0], sizes = [8, 32], strides = [1, 1]} : vector<8x64xf32> to vector<8x32xf32>
    %c0_47 = arith.constant 0 : index
    %c448 = arith.constant 448 : index
    %240 = vector.load %arg7[%c0_47, %c448] : memref<8x512xf32, #tpu.memory_space<vmem>>, vector<8x32xf32>
    tpu.vector_store %arg7[%c0_47, %c448], %239 {strides = array<i32>} : memref<8x512xf32, #tpu.memory_space<vmem>>, vector<8x32xf32>,
    %241 = vector.extract_strided_slice %238 {offsets = [0, 32], sizes = [8, 32], strides = [1, 1]} : vector<8x64xf32> to vector<8x32xf32>
    %c0_48 = arith.constant 0 : index
    %c32 = arith.constant 32 : index
    %242 = vector.load %arg7[%c0_48, %c32] : memref<8x512xf32, #tpu.memory_space<vmem>>, vector<8x32xf32>
    tpu.vector_store %arg7[%c0_48, %c32], %241 {strides = array<i32>} : memref<8x512xf32, #tpu.memory_space<vmem>>, vector<8x32xf32>,
    %243 = vector.extract_strided_slice %238 {offsets = [0, 0], sizes = [8, 32], strides = [1, 1]} : vector<8x64xf32> to vector<8x32xf32>
    %c0_49 = arith.constant 0 : index
    %c0_50 = arith.constant 0 : index
    %c0_51 = arith.constant 0 : index
    %244 = vector.load %arg8[%c0_49, %c0_50, %c0_51] : memref<2x8x32xf32, #tpu.memory_space<vmem>>, vector<1x8x32xf32>
    %245 = vector.shape_cast %244 : vector<1x8x32xf32> to vector<8x32xf32>
    %246 = vector.shape_cast %243 : vector<8x32xf32> to vector<1x8x32xf32>
    tpu.vector_store %arg8[%c0_49, %c0_50, %c0_51], %246 {strides = array<i32>} : memref<2x8x32xf32, #tpu.memory_space<vmem>>, vector<1x8x32xf32>,
    %247 = vector.extract_strided_slice %238 {offsets = [0, 32], sizes = [8, 32], strides = [1, 1]} : vector<8x64xf32> to vector<8x32xf32>
    %c1 = arith.constant 1 : index
    %c0_52 = arith.constant 0 : index
    %c0_53 = arith.constant 0 : index
    %248 = vector.load %arg8[%c1, %c0_52, %c0_53] : memref<2x8x32xf32, #tpu.memory_space<vmem>>, vector<1x8x32xf32>
    %249 = vector.shape_cast %248 : vector<1x8x32xf32> to vector<8x32xf32>
    %250 = vector.shape_cast %247 : vector<8x32xf32> to vector<1x8x32xf32>
    tpu.vector_store %arg8[%c1, %c0_52, %c0_53], %250 {strides = array<i32>} : memref<2x8x32xf32, #tpu.memory_space<vmem>>, vector<1x8x32xf32>,
    %251 = vector.extract_strided_slice %238 {offsets = [0, 0], sizes = [8, 32], strides = [1, 1]} : vector<8x64xf32> to vector<8x32xf32>
    %252 = vector.extract_strided_slice %238 {offsets = [0, 32], sizes = [8, 32], strides = [1, 1]} : vector<8x64xf32> to vector<8x32xf32>
    %253 = arith.addf %251, %252 : vector<8x32xf32>
    %cst_54 = arith.constant 5.000000e-01 : f32
    %254 = vector.broadcast %cst_54 : f32 to vector<8x32xf32>
    %255 = arith.mulf %253, %254 : vector<8x32xf32>
    %256 = arith.truncf %255 : vector<8x32xf32> to vector<8x32xbf16>
    %c0_55 = arith.constant 0 : index
    %c0_56 = arith.constant 0 : index
    %257 = vector.load %arg4[%c0_55, %c0_56] : memref<32x8xbf16, #tpu.memory_space<vmem>>, vector<32x8xbf16>
    %cst_57 = arith.constant dense<0.000000e+00> : vector<8x8xf32>
    %258 = tpu.matmul %256, %257, %cst_57 {dimension_numbers = #tpu.dot_dimension_numbers<[1], [0], [0], [1], [0, 0, 1, 1], [], []>} : vector<8x32xbf16>, vector<32x8xbf16>, vector<8x8xf32> -> vector<8x8xf32>
    %c0_58 = arith.constant 0 : index
    %c0_59 = arith.constant 0 : index
    %259 = vector.load %arg5[%c0_58, %c0_59] : memref<1x8xf32, #tpu.memory_space<vmem>>, vector<1x8xf32>
    %260 = vector.broadcast %259 : vector<1x8xf32> to vector<8x8xf32>
    %261 = arith.addf %258, %260 : vector<8x8xf32>
    %c0_60 = arith.constant 0 : index
    %c0_61 = arith.constant 0 : index
    %c0_62 = arith.constant 0 : index
    %262 = vector.load %arg6[%c0_60, %c0_61, %c0_62] : memref<1x8x8xf32, #tpu.memory_space<vmem>>, vector<1x8x8xf32>
    %263 = vector.shape_cast %262 : vector<1x8x8xf32> to vector<8x8xf32>
    %264 = vector.shape_cast %261 : vector<8x8xf32> to vector<1x8x8xf32>
    tpu.vector_store %arg6[%c0_60, %c0_61, %c0_62], %264 {strides = array<i32>} : memref<1x8x8xf32, #tpu.memory_space<vmem>>, vector<1x8x8xf32>,
    return
  }
}

</mosaic_0001>

<llo_original>
// kernel: gru_net_forward.1
$region0: #{gru_net_forward.1}
  #allocation0 [shape = 'u32[]', space=smem, size = 0x4, offset = 0x4, fixed_abs, tag = 'smem constant byte address 0x4 - core index']
  #allocation1 [shape = 'u32[72,128]{1,0:T(1,128)}', space=vmem, size = 0x9000, scoped, tag = 'internal scratch']
  %s0 = inlined_call_operand.vmem [shape: s32[64,2], index: 0, kind: input, shape index: {}]
  %s1 = inlined_call_operand.vmem [shape: bf16[40,192], index: 1, kind: input, shape index: {}]
  %s2 = inlined_call_operand.vmem [shape: bf16[64,192], index: 2, kind: input, shape index: {}]
  %s3 = inlined_call_operand.vmem [shape: f32[1,64], index: 3, kind: input, shape index: {}]
  %s4 = inlined_call_operand.vmem [shape: bf16[32,8], index: 4, kind: input, shape index: {}]
  %s5 = inlined_call_operand.vmem [shape: f32[1,8], index: 5, kind: input, shape index: {}]
  %s6 = inlined_call_operand.vmem [shape: f32[1,8,8], index: 6, kind: output, shape index: {0}]
  %s7 = inlined_call_operand.vmem [shape: f32[8,512], index: 7, kind: output, shape index: {1}]
  %s8 = inlined_call_operand.vmem [shape: f32[2,8,32], index: 8, kind: output, shape index: {2}]
  %9 = xla_tuple %s6, %s7, %s8
  %s10 = sld [smem:[#allocation0]]
  $region50: #{gru_net_forward.1} parent=0
    _
  %s12 = ssub.s32 1, %s10
  %s13 = scalar_select 0, %s12, %s10
  // Predicated region
  $region2: #{gru_net_forward.1} parent=0 // pred_check
    _
  $region3: #{gru_net_forward.1} parent=0 // pred_check_branch
    %15 = sbr.rel (0) target = $region5
  $region4: #{gru_net_forward.1} parent=0 // pred_region
    _
  $region5: #{gru_net_forward.1} parent=0 // pred_fallthru
    _
  // Predicated region
  $region6: #{gru_net_forward.1} parent=0 // pred_check
    _
  $region7: #{gru_net_forward.1} parent=0 // pred_check_branch
    %17 = sbr.rel (0) target = $region9
  $region8: #{gru_net_forward.1} parent=0 // pred_region
    _
  $region9: #{gru_net_forward.1} parent=0 // pred_fallthru
    _
  // Predicated region
  $region10: #{gru_net_forward.1} parent=0 // pred_check
    _
  $region11: #{gru_net_forward.1} parent=0 // pred_check_branch
    %19 = sbr.rel (0) target = $region13
  $region12: #{gru_net_forward.1} parent=0 // pred_region
    _
  $region13: #{gru_net_forward.1} parent=0 // pred_fallthru
    _
  // Predicated region
  $region14: #{gru_net_forward.1} parent=0 // pred_check
    _
  $region15: #{gru_net_forward.1} parent=0 // pred_check_branch
    %21 = sbr.rel (0) target = $region17
  $region16: #{gru_net_forward.1} parent=0 // pred_region
    _
  $region17: #{gru_net_forward.1} parent=0 // pred_fallthru
    _
  // Predicated region
  $region18: #{gru_net_forward.1} parent=0 // pred_check
    _
  $region19: #{gru_net_forward.1} parent=0 // pred_check_branch
    %23 = sbr.rel (0) target = $region21
  $region20: #{gru_net_forward.1} parent=0 // pred_region
    _
  $region21: #{gru_net_forward.1} parent=0 // pred_fallthru
    _
  // Predicated region
  $region22: #{gru_net_forward.1} parent=0 // pred_check
    _
  $region23: #{gru_net_forward.1} parent=0 // pred_check_branch
    %25 = sbr.rel (0) target = $region25
  $region24: #{gru_net_forward.1} parent=0 // pred_region
    _
  $region25: #{gru_net_forward.1} parent=0 // pred_fallthru
    _
  %v27 = vld [vmem:[%s0] sm:$0xff]
  %v28 = vld [vmem:[%s0 + $0x8] sm:$0xff]
  %v29 = vld [vmem:[%s0 + $0x10] sm:$0xff]
  %v30 = vld [vmem:[%s0 + $0x18] sm:$0xff]
  %v31 = vld [vmem:[%s0 + $0x20] sm:$0xff]
  %v32 = vld [vmem:[%s0 + $0x28] sm:$0xff]
  %v33 = vld [vmem:[%s0 + $0x30] sm:$0xff]
  %v34 = vld [vmem:[%s0 + $0x38] sm:$0xff]
  %v35 = vlaneseq
  %v36 = vand.u32 %v35, 127
  %37 = vset.pattern.permute.xlu0 0
  %38 = vperm.xlu0 %37, %v27
  %v39 = vpop.permute.xlu0 %38
  %40 = vset.pattern.permute.xlu0 0
  %41 = vperm.xlu0 %40, %v28
  %v42 = vpop.permute.xlu0 %41
  %43 = vset.pattern.permute.xlu0 0
  %44 = vperm.xlu0 %43, %v29
  %v45 = vpop.permute.xlu0 %44
  %46 = vset.pattern.permute.xlu0 0
  %47 = vperm.xlu0 %46, %v30
  %v48 = vpop.permute.xlu0 %47
  %49 = vset.pattern.permute.xlu0 0
  %50 = vperm.xlu0 %49, %v31
  %v51 = vpop.permute.xlu0 %50
  %52 = vset.pattern.permute.xlu0 0
  %53 = vperm.xlu0 %52, %v32
  %v54 = vpop.permute.xlu0 %53
  %55 = vset.pattern.permute.xlu0 0
  %56 = vperm.xlu0 %55, %v33
  %v57 = vpop.permute.xlu0 %56
  %58 = vset.pattern.permute.xlu0 0
  %59 = vperm.xlu0 %58, %v34
  %v60 = vpop.permute.xlu0 %59
  %vm61 = vcmp.eq.s32.totalorder %v36, %v39
  %vm62 = vcmp.eq.s32.totalorder %v36, %v42
  %vm63 = vcmp.eq.s32.totalorder %v36, %v45
  %vm64 = vcmp.eq.s32.totalorder %v36, %v48
  %vm65 = vcmp.eq.s32.totalorder %v36, %v51
  %vm66 = vcmp.eq.s32.totalorder %v36, %v54
  %vm67 = vcmp.eq.s32.totalorder %v36, %v57
  %vm68 = vcmp.eq.s32.totalorder %v36, %v60
  %69 = vset.pattern.permute.xlu0 1
  %70 = vperm.xlu0 %69, %v27
  %v71 = vpop.permute.xlu0 %70
  %72 = vset.pattern.permute.xlu0 1
  %73 = vperm.xlu0 %72, %v28
  %v74 = vpop.permute.xlu0 %73
  %75 = vset.pattern.permute.xlu0 1
  %76 = vperm.xlu0 %75, %v29
  %v77 = vpop.permute.xlu0 %76
  %78 = vset.pattern.permute.xlu0 1
  %79 = vperm.xlu0 %78, %v30
  %v80 = vpop.permute.xlu0 %79
  %81 = vset.pattern.permute.xlu0 1
  %82 = vperm.xlu0 %81, %v31
  %v83 = vpop.permute.xlu0 %82
  %84 = vset.pattern.permute.xlu0 1
  %85 = vperm.xlu0 %84, %v32
  %v86 = vpop.permute.xlu0 %85
  %87 = vset.pattern.permute.xlu0 1
  %88 = vperm.xlu0 %87, %v33
  %v89 = vpop.permute.xlu0 %88
  %90 = vset.pattern.permute.xlu0 1
  %91 = vperm.xlu0 %90, %v34
  %v92 = vpop.permute.xlu0 %91
  %vm93 = vcmp.eq.s32.totalorder %v36, %v71
  %vm94 = vcmp.eq.s32.totalorder %v36, %v74
  %vm95 = vcmp.eq.s32.totalorder %v36, %v77
  %vm96 = vcmp.eq.s32.totalorder %v36, %v80
  %vm97 = vcmp.eq.s32.totalorder %v36, %v83
  %vm98 = vcmp.eq.s32.totalorder %v36, %v86
  %vm99 = vcmp.eq.s32.totalorder %v36, %v89
  %vm100 = vcmp.eq.s32.totalorder %v36, %v92
  %vm101 = vmor %vm61, %vm93
  %vm102 = vmor %vm62, %vm94
  %vm103 = vmor %vm63, %vm95
  %vm104 = vmor %vm64, %vm96
  %vm105 = vmor %vm65, %vm97
  %vm106 = vmor %vm66, %vm98
  %vm107 = vmor %vm67, %vm99
  %vm108 = vmor %vm68, %vm100
  %v109 = vsel %vm101, 1, 0
  %v110 = vsel %vm102, 1, 0
  %v111 = vsel %vm103, 1, 0
  %v112 = vsel %vm104, 1, 0
  %v113 = vsel %vm105, 1, 0
  %v114 = vsel %vm106, 1, 0
  %v115 = vsel %vm107, 1, 0
  %v116 = vsel %vm108, 1, 0
  %v117 = vcvt.s32.f32 %v109
  %v118 = vcvt.s32.f32 %v110
  %v119 = vcvt.s32.f32 %v111
  %v120 = vcvt.s32.f32 %v112
  %v121 = vcvt.s32.f32 %v113
  %v122 = vcvt.s32.f32 %v114
  %v123 = vcvt.s32.f32 %v115
  %v124 = vcvt.s32.f32 %v116
  %v125 = vpack.c.bf16 %v118, %v117
  %v126 = vpack.c.bf16 %v120, %v119
  %v127 = vpack.c.bf16 %v122, %v121
  %v128 = vpack.c.bf16 %v124, %v123
  %v129 = vld [vmem:[%s1] sm:$0xff]
  %v130 = vld [vmem:[%s1 + $0x8] sm:$0xff]
  %v131 = vld [vmem:[%s1 + $0x10] sm:$0xff]
  %v132 = vld [vmem:[%s1 + $0x18] sm:$0xff]
  %v133 = vld [vmem:[%s1 + $0x20] sm:$0xff]
  %v139 = vunpack.c.l.b16 %v129
  %v140 = vunpack.c.h.b16 %v129
  %v141 = vunpack.c.l.b16 %v130
  %v142 = vunpack.c.h.b16 %v130
  %v143 = vunpack.c.l.b16 %v131
  %v144 = vunpack.c.h.b16 %v131
  %v145 = vunpack.c.l.b16 %v132
  %v146 = vunpack.c.h.b16 %v132
  %v147 = vunpack.c.l.b16 %v133
  %v148 = vunpack.c.h.b16 %v133
  %v149 = vpack.c.b16 %v141, %v139
  %v150 = vpack.c.b16 %v142, %v140
  %v151 = vpack.c.b16 %v145, %v143
  %v152 = vpack.c.b16 %v146, %v144
  %v153 = vpack.c.b16 %v147, %v147
  %v154 = vpack.c.b16 %v148, %v148
  %vm159 = vcmask 326656
  %v161 = vsel %vm159, %v125, 0
  %v164 = vsel %vm159, %v126, 0
  %v167 = vsel %vm159, %v127, 0
  %v170 = vsel %vm159, %v128, 0
  %vm172 = vcmask 1043456
  %v174 = vsel %vm172, %v153, 0
  %v177 = vsel %vm172, %v154, 0
  %179 = vmatpush.bf16.msra.mxu0 0
  %180 = vmatpush.bf16.msra.mxu0 0
  %181 = vmatpush.bf16.msra.mxu0 0
  %182 = vmatpush.bf16.msra.mxu0 0
  %183 = vmatpush.bf16.msra.mxu0 0
  %184 = vmatpush.bf16.msra.mxu0 %v174
  %185 = vmatpush.bf16.msra.mxu0 %v151
  %186 = vmatpush.bf16.msra.mxu0 %v149
  %187 = vmatmul.bf16.gmra.mxu0 %v161
  %v188 = vpop.f32.mrf.mxu0
  %v189 = vadd.f32 0.0, %v188
  %v190 = vpop.f32.mrf.mxu0
  %v191 = vadd.f32 0.0, %v190
  %192 = vmatmul.bf16.gmra.mxu0 %v164
  %v193 = vpop.f32.mrf.mxu0
  %v194 = vadd.f32 0.0, %v193
  %v195 = vpop.f32.mrf.mxu0
  %v196 = vadd.f32 0.0, %v195
  %197 = vmatmul.bf16.gmra.mxu0 %v167
  %v198 = vpop.f32.mrf.mxu0
  %v199 = vadd.f32 0.0, %v198
  %v200 = vpop.f32.mrf.mxu0
  %v201 = vadd.f32 0.0, %v200
  %202 = vmatmul.bf16.gmra.mxu0 %v170
  %v203 = vpop.f32.mrf.mxu0
  %v204 = vadd.f32 0.0, %v203
  %v205 = vpop.f32.mrf.mxu0
  %v206 = vadd.f32 0.0, %v205
  %207 = vdwg.mxu0
  %208 = vmatpush.bf16.msra.mxu0 0
  %209 = vmatpush.bf16.msra.mxu0 0
  %210 = vmatpush.bf16.msra.mxu0 0
  %211 = vmatpush.bf16.msra.mxu0 0
  %212 = vmatpush.bf16.msra.mxu0 0
  %213 = vmatpush.bf16.msra.mxu0 %v177
  %214 = vmatpush.bf16.msra.mxu0 %v152
  %215 = vmatpush.bf16.msra.mxu0 %v150
  %216 = vmatmul.bf16.gmra.mxu0 %v161
  %v217 = vpop.f32.mrf.mxu0
  %v218 = vadd.f32 0.0, %v217
  %v219 = vpop.f32.mrf.mxu0
  %v220 = vadd.f32 0.0, %v219
  %221 = vmatmul.bf16.gmra.mxu0 %v164
  %v222 = vpop.f32.mrf.mxu0
  %v223 = vadd.f32 0.0, %v222
  %v224 = vpop.f32.mrf.mxu0
  %v225 = vadd.f32 0.0, %v224
  %226 = vmatmul.bf16.gmra.mxu0 %v167
  %v227 = vpop.f32.mrf.mxu0
  %v228 = vadd.f32 0.0, %v227
  %v229 = vpop.f32.mrf.mxu0
  %v230 = vadd.f32 0.0, %v229
  %231 = vmatmul.bf16.gmra.mxu0 %v170
  %v232 = vpop.f32.mrf.mxu0
  %v233 = vadd.f32 0.0, %v232
  %v234 = vpop.f32.mrf.mxu0
  %v235 = vadd.f32 0.0, %v234
  %236 = vdwg.mxu0
  %v237 = vld [vmem:[%s2] sm:$0xff]
  %v238 = vld [vmem:[%s2 + $0x8] sm:$0xff]
  %v239 = vld [vmem:[%s2 + $0x10] sm:$0xff]
  %v240 = vld [vmem:[%s2 + $0x18] sm:$0xff]
  %v241 = vld [vmem:[%s2 + $0x20] sm:$0xff]
  %v242 = vld [vmem:[%s2 + $0x28] sm:$0xff]
  %v243 = vld [vmem:[%s2 + $0x30] sm:$0xff]
  %v244 = vld [vmem:[%s2 + $0x38] sm:$0xff]
  %v245 = vld [vmem:[%s3] sm:$0x1]
  %v247 = vperm.slane %v245, 0
  %v257 = vunpack.c.l.b16 %v237
  %v258 = vunpack.c.h.b16 %v237
  %v259 = vunpack.c.l.b16 %v238
  %v260 = vunpack.c.h.b16 %v238
  %v261 = vunpack.c.l.b16 %v239
  %v262 = vunpack.c.h.b16 %v239
  %v263 = vunpack.c.l.b16 %v240
  %v264 = vunpack.c.h.b16 %v240
  %v265 = vunpack.c.l.b16 %v241
  %v266 = vunpack.c.h.b16 %v241
  %v267 = vunpack.c.l.b16 %v242
  %v268 = vunpack.c.h.b16 %v242
  %v269 = vunpack.c.l.b16 %v243
  %v270 = vunpack.c.h.b16 %v243
  %v271 = vunpack.c.l.b16 %v244
  %v272 = vunpack.c.h.b16 %v244
  %v273 = vpack.c.b16 %v259, %v257
  %v274 = vpack.c.b16 %v260, %v258
  %v275 = vpack.c.b16 %v263, %v261
  %v276 = vpack.c.b16 %v264, %v262
  %v277 = vpack.c.b16 %v267, %v265
  %v278 = vpack.c.b16 %v268, %v266
  %v279 = vpack.c.b16 %v271, %v269
  %v280 = vpack.c.b16 %v272, %v270
  %vm289 = vcmask 523264
  %v291 = vsel %vm289, 0, 0
  %293 = vmatpush.bf16.msra.mxu0 0
  %294 = vmatpush.bf16.msra.mxu0 0
  %295 = vmatpush.bf16.msra.mxu0 0
  %296 = vmatpush.bf16.msra.mxu0 0
  %297 = vmatpush.bf16.msra.mxu0 %v279
  %298 = vmatpush.bf16.msra.mxu0 %v277
  %299 = vmatpush.bf16.msra.mxu0 %v275
  %300 = vmatpush.bf16.msra.mxu0 %v273
  %301 = vmatmul.bf16.gmra.mxu0 %v291
  %v302 = vpop.f32.mrf.mxu0
  %v303 = vadd.f32 0.0, %v302
  %v304 = vpop.f32.mrf.mxu0
  %305 = vdwg.mxu0
  %306 = vmatpush.bf16.msra.mxu0 0
  %307 = vmatpush.bf16.msra.mxu0 0
  %308 = vmatpush.bf16.msra.mxu0 0
  %309 = vmatpush.bf16.msra.mxu0 0
  %310 = vmatpush.bf16.msra.mxu0 %v280
  %311 = vmatpush.bf16.msra.mxu0 %v278
  %312 = vmatpush.bf16.msra.mxu0 %v276
  %313 = vmatpush.bf16.msra.mxu0 %v274
  %314 = vmatmul.bf16.gmra.mxu0 %v291
  %v315 = vpop.f32.mrf.mxu0
  %v316 = vadd.f32 0.0, %v315
  %v317 = vpop.f32.mrf.mxu0
  %318 = vdwg.mxu0
  %v319 = vadd.f32 %v189, %v303
  %v320 = vxor.u32 %v319, 2147483648
  %v321 = vmul.f32 %v320, 1.442695
  %v322 = vpow.pop %v321
  %v323 = vadd.f32 %v322, 1.0
  %v324 = vrcp.pop %v323
  %v325 = vmul.f32 %v323, %v324
  %v326 = vsub.f32 1.0, %v325
  %v327 = vmul.f32 %v324, %v326
  %v328 = vadd.f32 %v324, %v327
  %vm329 = vweird.f32 %v323
  %vm330 = vweird.f32 %v324
  %vm331 = vmor %vm329, %vm330
  %v332 = vsel %vm331, %v324, %v328
  %v333 = vand.u32 2147483647, %v323
  %vm334 = vcmp.eq.f32.partialorder %v333, 8.507059e+37
  %v335 = vand.u32 %v323, 2147483648
  %v336 = vor.u32 1.1754944e-38, %v335
  %v337 = vsel %vm334, %v336, %v332
  %v338 = vmul.f32 1.0, %v337
  %v339 = vadd.f32 %v316, %v247
  %v340 = vmul.f32 %v338, %v339
  %v341 = vadd.f32 %v218, %v340
  %v342 = vtanh.pop %v341
  %v343 = vsub.f32 1.0, %v338
  %345 = vrot.lane.b32.xlu0 %v342, 64
  %v346 = vpop.permute.xlu0 %345
  %v348 = vmul.f32 %v343, %v346
  %v349 = vmul.f32 %v338, 0.0
  %v350 = vadd.f32 %v348, %v349
  %352 = vrot.lane.b32.xlu0 %v350, 64
  %v353 = vpop.permute.xlu0 %352
  %vm355 = vcmask 261120
  %356 = vst.msk [vmem:[%s7] sm:$0xff] %vm355, %v353
  %vm357 = vcmask 1048320
  %358 = vst.msk [vmem:[%s7 + $0x18] sm:$0xff] %vm357, %v350
  %v359 = vpack.c.bf16 %v350, %v350
  %361 = vrot.lane.b32.xlu0 %v359, 64
  %v362 = vpop.permute.xlu0 %361
  %v364 = vsel %vm289, %v362, 0
  %366 = vmatpush.bf16.msra.mxu0 0
  %367 = vmatpush.bf16.msra.mxu0 0
  %368 = vmatpush.bf16.msra.mxu0 0
  %369 = vmatpush.bf16.msra.mxu0 0
  %370 = vmatpush.bf16.msra.mxu0 %v279
  %371 = vmatpush.bf16.msra.mxu0 %v277
  %372 = vmatpush.bf16.msra.mxu0 %v275
  %373 = vmatpush.bf16.msra.mxu0 %v273
  %374 = vmatmul.bf16.gmra.mxu0 %v364
  %v375 = vpop.f32.mrf.mxu0
  %v376 = vadd.f32 0.0, %v375
  %v377 = vpop.f32.mrf.mxu0
  %378 = vdwg.mxu0
  %379 = vmatpush.bf16.msra.mxu0 0
  %380 = vmatpush.bf16.msra.mxu0 0
  %381 = vmatpush.bf16.msra.mxu0 0
  %382 = vmatpush.bf16.msra.mxu0 0
  %383 = vmatpush.bf16.msra.mxu0 %v280
  %384 = vmatpush.bf16.msra.mxu0 %v278
  %385 = vmatpush.bf16.msra.mxu0 %v276
  %386 = vmatpush.bf16.msra.mxu0 %v274
  %387 = vmatmul.bf16.gmra.mxu0 %v364
  %v388 = vpop.f32.mrf.mxu0
  %v389 = vadd.f32 0.0, %v388
  %v390 = vpop.f32.mrf.mxu0
  %391 = vdwg.mxu0
  %v392 = vadd.f32 %v191, %v376
  %v393 = vxor.u32 %v392, 2147483648
  %v394 = vmul.f32 %v393, 1.442695
  %v395 = vpow.pop %v394
  %v396 = vadd.f32 %v395, 1.0
  %v397 = vrcp.pop %v396
  %v398 = vmul.f32 %v396, %v397
  %v399 = vsub.f32 1.0, %v398
  %v400 = vmul.f32 %v397, %v399
  %v401 = vadd.f32 %v397, %v400
  %vm402 = vweird.f32 %v396
  %vm403 = vweird.f32 %v397
  %vm404 = vmor %vm402, %vm403
  %v405 = vsel %vm404, %v397, %v401
  %v406 = vand.u32 2147483647, %v396
  %vm407 = vcmp.eq.f32.partialorder %v406, 8.507059e+37
  %v408 = vand.u32 %v396, 2147483648
  %v409 = vor.u32 1.1754944e-38, %v408
  %v410 = vsel %vm407, %v409, %v405
  %v411 = vmul.f32 1.0, %v410
  %v412 = vadd.f32 %v389, %v247
  %v413 = vmul.f32 %v411, %v412
  %v414 = vadd.f32 %v220, %v413
  %v415 = vtanh.pop %v414
  %v416 = vsub.f32 1.0, %v411
  %418 = vrot.lane.b32.xlu0 %v415, 64
  %v419 = vpop.permute.xlu0 %418
  %v421 = vmul.f32 %v416, %v419
  %v422 = vmul.f32 %v411, %v350
  %v423 = vadd.f32 %v421, %v422
  %vm424 = vcmask 785920
  %425 = vst.msk [vmem:[%s7] sm:$0xff] %vm424, %v423
  %427 = vrot.lane.b32.xlu0 %v423, 64
  %v428 = vpop.permute.xlu0 %427
  %vm430 = vcmask 523520
  %431 = vst.msk [vmem:[%s7 + $0x18] sm:$0xff] %vm430, %v428
  %v432 = vpack.c.bf16 %v423, %v423
  %434 = vrot.lane.b32.xlu0 %v432, 64
  %v435 = vpop.permute.xlu0 %434
  %v437 = vsel %vm289, %v435, 0
  %439 = vmatpush.bf16.msra.mxu0 0
  %440 = vmatpush.bf16.msra.mxu0 0
  %441 = vmatpush.bf16.msra.mxu0 0
  %442 = vmatpush.bf16.msra.mxu0 0
  %443 = vmatpush.bf16.msra.mxu0 %v279
  %444 = vmatpush.bf16.msra.mxu0 %v277
  %445 = vmatpush.bf16.msra.mxu0 %v275
  %446 = vmatpush.bf16.msra.mxu0 %v273
  %447 = vmatmul.bf16.gmra.mxu0 %v437
  %v448 = vpop.f32.mrf.mxu0
  %v449 = vadd.f32 0.0, %v448
  %v450 = vpop.f32.mrf.mxu0
  %451 = vdwg.mxu0
  %452 = vmatpush.bf16.msra.mxu0 0
  %453 = vmatpush.bf16.msra.mxu0 0
  %454 = vmatpush.bf16.msra.mxu0 0
  %455 = vmatpush.bf16.msra.mxu0 0
  %456 = vmatpush.bf16.msra.mxu0 %v280
  %457 = vmatpush.bf16.msra.mxu0 %v278
  %458 = vmatpush.bf16.msra.mxu0 %v276
  %459 = vmatpush.bf16.msra.mxu0 %v274
  %460 = vmatmul.bf16.gmra.mxu0 %v437
  %v461 = vpop.f32.mrf.mxu0
  %v462 = vadd.f32 0.0, %v461
  %v463 = vpop.f32.mrf.mxu0
  %464 = vdwg.mxu0
  %v465 = vadd.f32 %v194, %v449
  %v466 = vxor.u32 %v465, 2147483648
  %v467 = vmul.f32 %v466, 1.442695
  %v468 = vpow.pop %v467
  %v469 = vadd.f32 %v468, 1.0
  %v470 = vrcp.pop %v469
  %v471 = vmul.f32 %v469, %v470
  %v472 = vsub.f32 1.0, %v471
  %v473 = vmul.f32 %v470, %v472
  %v474 = vadd.f32 %v470, %v473
  %vm475 = vweird.f32 %v469
  %vm476 = vweird.f32 %v470
  %vm477 = vmor %vm475, %vm476
  %v478 = vsel %vm477, %v470, %v474
  %v479 = vand.u32 2147483647, %v469
  %vm480 = vcmp.eq.f32.partialorder %v479, 8.507059e+37
  %v481 = vand.u32 %v469, 2147483648
  %v482 = vor.u32 1.1754944e-38, %v481
  %v483 = vsel %vm480, %v482, %v478
  %v484 = vmul.f32 1.0, %v483
  %v485 = vadd.f32 %v462, %v247
  %v486 = vmul.f32 %v484, %v485
  %v487 = vadd.f32 %v223, %v486
  %v488 = vtanh.pop %v487
  %v489 = vsub.f32 1.0, %v484
  %491 = vrot.lane.b32.xlu0 %v488, 64
  %v492 = vpop.permute.xlu0 %491
  %v494 = vmul.f32 %v489, %v492
  %v495 = vmul.f32 %v484, %v423
  %v496 = vadd.f32 %v494, %v495
  %498 = vrot.lane.b32.xlu0 %v496, 64
  %v499 = vpop.permute.xlu0 %498
  %501 = vst.msk [vmem:[%s7 + $0x8] sm:$0xff] %vm355, %v499
  %502 = vst.msk [vmem:[%s7 + $0x10] sm:$0xff] %vm357, %v496
  %v503 = vpack.c.bf16 %v496, %v496
  %505 = vrot.lane.b32.xlu0 %v503, 64
  %v506 = vpop.permute.xlu0 %505
  %v508 = vsel %vm289, %v506, 0
  %510 = vmatpush.bf16.msra.mxu0 0
  %511 = vmatpush.bf16.msra.mxu0 0
  %512 = vmatpush.bf16.msra.mxu0 0
  %513 = vmatpush.bf16.msra.mxu0 0
  %514 = vmatpush.bf16.msra.mxu0 %v279
  %515 = vmatpush.bf16.msra.mxu0 %v277
  %516 = vmatpush.bf16.msra.mxu0 %v275
  %517 = vmatpush.bf16.msra.mxu0 %v273
  %518 = vmatmul.bf16.gmra.mxu0 %v508
  %v519 = vpop.f32.mrf.mxu0
  %v520 = vadd.f32 0.0, %v519
  %v521 = vpop.f32.mrf.mxu0
  %522 = vdwg.mxu0
  %523 = vmatpush.bf16.msra.mxu0 0
  %524 = vmatpush.bf16.msra.mxu0 0
  %525 = vmatpush.bf16.msra.mxu0 0
  %526 = vmatpush.bf16.msra.mxu0 0
  %527 = vmatpush.bf16.msra.mxu0 %v280
  %528 = vmatpush.bf16.msra.mxu0 %v278
  %529 = vmatpush.bf16.msra.mxu0 %v276
  %530 = vmatpush.bf16.msra.mxu0 %v274
  %531 = vmatmul.bf16.gmra.mxu0 %v508
  %v532 = vpop.f32.mrf.mxu0
  %v533 = vadd.f32 0.0, %v532
  %v534 = vpop.f32.mrf.mxu0
  %535 = vdwg.mxu0
  %v536 = vadd.f32 %v196, %v520
  %v537 = vxor.u32 %v536, 2147483648
  %v538 = vmul.f32 %v537, 1.442695
  %v539 = vpow.pop %v538
  %v540 = vadd.f32 %v539, 1.0
  %v541 = vrcp.pop %v540
  %v542 = vmul.f32 %v540, %v541
  %v543 = vsub.f32 1.0, %v542
  %v544 = vmul.f32 %v541, %v543
  %v545 = vadd.f32 %v541, %v544
  %vm546 = vweird.f32 %v540
  %vm547 = vweird.f32 %v541
  %vm548 = vmor %vm546, %vm547
  %v549 = vsel %vm548, %v541, %v545
  %v550 = vand.u32 2147483647, %v540
  %vm551 = vcmp.eq.f32.partialorder %v550, 8.507059e+37
  %v552 = vand.u32 %v540, 2147483648
  %v553 = vor.u32 1.1754944e-38, %v552
  %v554 = vsel %vm551, %v553, %v549
  %v555 = vmul.f32 1.0, %v554
  %v556 = vadd.f32 %v533, %v247
  %v557 = vmul.f32 %v555, %v556
  %v558 = vadd.f32 %v225, %v557
  %v559 = vtanh.pop %v558
  %v560 = vsub.f32 1.0, %v555
  %562 = vrot.lane.b32.xlu0 %v559, 64
  %v563 = vpop.permute.xlu0 %562
  %v565 = vmul.f32 %v560, %v563
  %v566 = vmul.f32 %v555, %v496
  %v567 = vadd.f32 %v565, %v566
  %568 = vst.msk [vmem:[%s7 + $0x8] sm:$0xff] %vm424, %v567
  %570 = vrot.lane.b32.xlu0 %v567, 64
  %v571 = vpop.permute.xlu0 %570
  %573 = vst.msk [vmem:[%s7 + $0x10] sm:$0xff] %vm430, %v571
  %v574 = vpack.c.bf16 %v567, %v567
  %576 = vrot.lane.b32.xlu0 %v574, 64
  %v577 = vpop.permute.xlu0 %576
  %v579 = vsel %vm289, %v577, 0
  %581 = vmatpush.bf16.msra.mxu0 0
  %582 = vmatpush.bf16.msra.mxu0 0
  %583 = vmatpush.bf16.msra.mxu0 0
  %584 = vmatpush.bf16.msra.mxu0 0
  %585 = vmatpush.bf16.msra.mxu0 %v279
  %586 = vmatpush.bf16.msra.mxu0 %v277
  %587 = vmatpush.bf16.msra.mxu0 %v275
  %588 = vmatpush.bf16.msra.mxu0 %v273
  %589 = vmatmul.bf16.gmra.mxu0 %v579
  %v590 = vpop.f32.mrf.mxu0
  %v591 = vadd.f32 0.0, %v590
  %v592 = vpop.f32.mrf.mxu0
  %593 = vdwg.mxu0
  %594 = vmatpush.bf16.msra.mxu0 0
  %595 = vmatpush.bf16.msra.mxu0 0
  %596 = vmatpush.bf16.msra.mxu0 0
  %597 = vmatpush.bf16.msra.mxu0 0
  %598 = vmatpush.bf16.msra.mxu0 %v280
  %599 = vmatpush.bf16.msra.mxu0 %v278
  %600 = vmatpush.bf16.msra.mxu0 %v276
  %601 = vmatpush.bf16.msra.mxu0 %v274
  %602 = vmatmul.bf16.gmra.mxu0 %v579
  %v603 = vpop.f32.mrf.mxu0
  %v604 = vadd.f32 0.0, %v603
  %v605 = vpop.f32.mrf.mxu0
  %606 = vdwg.mxu0
  %v607 = vadd.f32 %v199, %v591
  %v608 = vxor.u32 %v607, 2147483648
  %v609 = vmul.f32 %v608, 1.442695
  %v610 = vpow.pop %v609
  %v611 = vadd.f32 %v610, 1.0
  %v612 = vrcp.pop %v611
  %v613 = vmul.f32 %v611, %v612
  %v614 = vsub.f32 1.0, %v613
  %v615 = vmul.f32 %v612, %v614
  %v616 = vadd.f32 %v612, %v615
  %vm617 = vweird.f32 %v611
  %vm618 = vweird.f32 %v612
  %vm619 = vmor %vm617, %vm618
  %v620 = vsel %vm619, %v612, %v616
  %v621 = vand.u32 2147483647, %v611
  %vm622 = vcmp.eq.f32.partialorder %v621, 8.507059e+37
  %v623 = vand.u32 %v611, 2147483648
  %v624 = vor.u32 1.1754944e-38, %v623
  %v625 = vsel %vm622, %v624, %v620
  %v626 = vmul.f32 1.0, %v625
  %v627 = vadd.f32 %v604, %v247
  %v628 = vmul.f32 %v626, %v627
  %v629 = vadd.f32 %v228, %v628
  %v630 = vtanh.pop %v629
  %v631 = vsub.f32 1.0, %v626
  %633 = vrot.lane.b32.xlu0 %v630, 64
  %v634 = vpop.permute.xlu0 %633
  %v636 = vmul.f32 %v631, %v634
  %v637 = vmul.f32 %v626, %v567
  %v638 = vadd.f32 %v636, %v637
  %640 = vrot.lane.b32.xlu0 %v638, 64
  %v641 = vpop.permute.xlu0 %640
  %643 = vst.msk [vmem:[%s7 + $0x10] sm:$0xff] %vm355, %v641
  %644 = vst.msk [vmem:[%s7 + $0x8] sm:$0xff] %vm357, %v638
  %v645 = vpack.c.bf16 %v638, %v638
  %647 = vrot.lane.b32.xlu0 %v645, 64
  %v648 = vpop.permute.xlu0 %647
  %v650 = vsel %vm289, %v648, 0
  %652 = vmatpush.bf16.msra.mxu0 0
  %653 = vmatpush.bf16.msra.mxu0 0
  %654 = vmatpush.bf16.msra.mxu0 0
  %655 = vmatpush.bf16.msra.mxu0 0
  %656 = vmatpush.bf16.msra.mxu0 %v279
  %657 = vmatpush.bf16.msra.mxu0 %v277
  %658 = vmatpush.bf16.msra.mxu0 %v275
  %659 = vmatpush.bf16.msra.mxu0 %v273
  %660 = vmatmul.bf16.gmra.mxu0 %v650
  %v661 = vpop.f32.mrf.mxu0
  %v662 = vadd.f32 0.0, %v661
  %v663 = vpop.f32.mrf.mxu0
  %664 = vdwg.mxu0
  %665 = vmatpush.bf16.msra.mxu0 0
  %666 = vmatpush.bf16.msra.mxu0 0
  %667 = vmatpush.bf16.msra.mxu0 0
  %668 = vmatpush.bf16.msra.mxu0 0
  %669 = vmatpush.bf16.msra.mxu0 %v280
  %670 = vmatpush.bf16.msra.mxu0 %v278
  %671 = vmatpush.bf16.msra.mxu0 %v276
  %672 = vmatpush.bf16.msra.mxu0 %v274
  %673 = vmatmul.bf16.gmra.mxu0 %v650
  %v674 = vpop.f32.mrf.mxu0
  %v675 = vadd.f32 0.0, %v674
  %v676 = vpop.f32.mrf.mxu0
  %677 = vdwg.mxu0
  %v678 = vadd.f32 %v201, %v662
  %v679 = vxor.u32 %v678, 2147483648
  %v680 = vmul.f32 %v679, 1.442695
  %v681 = vpow.pop %v680
  %v682 = vadd.f32 %v681, 1.0
  %v683 = vrcp.pop %v682
  %v684 = vmul.f32 %v682, %v683
  %v685 = vsub.f32 1.0, %v684
  %v686 = vmul.f32 %v683, %v685
  %v687 = vadd.f32 %v683, %v686
  %vm688 = vweird.f32 %v682
  %vm689 = vweird.f32 %v683
  %vm690 = vmor %vm688, %vm689
  %v691 = vsel %vm690, %v683, %v687
  %v692 = vand.u32 2147483647, %v682
  %vm693 = vcmp.eq.f32.partialorder %v692, 8.507059e+37
  %v694 = vand.u32 %v682, 2147483648
  %v695 = vor.u32 1.1754944e-38, %v694
  %v696 = vsel %vm693, %v695, %v691
  %v697 = vmul.f32 1.0, %v696
  %v698 = vadd.f32 %v675, %v247
  %v699 = vmul.f32 %v697, %v698
  %v700 = vadd.f32 %v230, %v699
  %v701 = vtanh.pop %v700
  %v702 = vsub.f32 1.0, %v697
  %704 = vrot.lane.b32.xlu0 %v701, 64
  %v705 = vpop.permute.xlu0 %704
  %v707 = vmul.f32 %v702, %v705
  %v708 = vmul.f32 %v697, %v638
  %v709 = vadd.f32 %v707, %v708
  %710 = vst.msk [vmem:[%s7 + $0x10] sm:$0xff] %vm424, %v709
  %712 = vrot.lane.b32.xlu0 %v709, 64
  %v713 = vpop.permute.xlu0 %712
  %715 = vst.msk [vmem:[%s7 + $0x8] sm:$0xff] %vm430, %v713
  %v716 = vpack.c.bf16 %v709, %v709
  %718 = vrot.lane.b32.xlu0 %v716, 64
  %v719 = vpop.permute.xlu0 %718
  %v721 = vsel %vm289, %v719, 0
  %723 = vmatpush.bf16.msra.mxu0 0
  %724 = vmatpush.bf16.msra.mxu0 0
  %725 = vmatpush.bf16.msra.mxu0 0
  %726 = vmatpush.bf16.msra.mxu0 0
  %727 = vmatpush.bf16.msra.mxu0 %v279
  %728 = vmatpush.bf16.msra.mxu0 %v277
  %729 = vmatpush.bf16.msra.mxu0 %v275
  %730 = vmatpush.bf16.msra.mxu0 %v273
  %731 = vmatmul.bf16.gmra.mxu0 %v721
  %v732 = vpop.f32.mrf.mxu0
  %v733 = vadd.f32 0.0, %v732
  %v734 = vpop.f32.mrf.mxu0
  %735 = vdwg.mxu0
  %736 = vmatpush.bf16.msra.mxu0 0
  %737 = vmatpush.bf16.msra.mxu0 0
  %738 = vmatpush.bf16.msra.mxu0 0
  %739 = vmatpush.bf16.msra.mxu0 0
  %740 = vmatpush.bf16.msra.mxu0 %v280
  %741 = vmatpush.bf16.msra.mxu0 %v278
  %742 = vmatpush.bf16.msra.mxu0 %v276
  %743 = vmatpush.bf16.msra.mxu0 %v274
  %744 = vmatmul.bf16.gmra.mxu0 %v721
  %v745 = vpop.f32.mrf.mxu0
  %v746 = vadd.f32 0.0, %v745
  %v747 = vpop.f32.mrf.mxu0
  %748 = vdwg.mxu0
  %v749 = vadd.f32 %v204, %v733
  %v750 = vxor.u32 %v749, 2147483648
  %v751 = vmul.f32 %v750, 1.442695
  %v752 = vpow.pop %v751
  %v753 = vadd.f32 %v752, 1.0
  %v754 = vrcp.pop %v753
  %v755 = vmul.f32 %v753, %v754
  %v756 = vsub.f32 1.0, %v755
  %v757 = vmul.f32 %v754, %v756
  %v758 = vadd.f32 %v754, %v757
  %vm759 = vweird.f32 %v753
  %vm760 = vweird.f32 %v754
  %vm761 = vmor %vm759, %vm760
  %v762 = vsel %vm761, %v754, %v758
  %v763 = vand.u32 2147483647, %v753
  %vm764 = vcmp.eq.f32.partialorder %v763, 8.507059e+37
  %v765 = vand.u32 %v753, 2147483648
  %v766 = vor.u32 1.1754944e-38, %v765
  %v767 = vsel %vm764, %v766, %v762
  %v768 = vmul.f32 1.0, %v767
  %v769 = vadd.f32 %v746, %v247
  %v770 = vmul.f32 %v768, %v769
  %v771 = vadd.f32 %v233, %v770
  %v772 = vtanh.pop %v771
  %v773 = vsub.f32 1.0, %v768
  %775 = vrot.lane.b32.xlu0 %v772, 64
  %v776 = vpop.permute.xlu0 %775
  %v778 = vmul.f32 %v773, %v776
  %v779 = vmul.f32 %v768, %v709
  %v780 = vadd.f32 %v778, %v779
  %782 = vrot.lane.b32.xlu0 %v780, 64
  %v783 = vpop.permute.xlu0 %782
  %785 = vst.msk [vmem:[%s7 + $0x18] sm:$0xff] %vm355, %v783
  %786 = vst.msk [vmem:[%s7] sm:$0xff] %vm357, %v780
  %v787 = vpack.c.bf16 %v780, %v780
  %789 = vrot.lane.b32.xlu0 %v787, 64
  %v790 = vpop.permute.xlu0 %789
  %v792 = vsel %vm289, %v790, 0
  %794 = vmatpush.bf16.msra.mxu0 0
  %795 = vmatpush.bf16.msra.mxu0 0
  %796 = vmatpush.bf16.msra.mxu0 0
  %797 = vmatpush.bf16.msra.mxu0 0
  %798 = vmatpush.bf16.msra.mxu0 %v279
  %799 = vmatpush.bf16.msra.mxu0 %v277
  %800 = vmatpush.bf16.msra.mxu0 %v275
  %801 = vmatpush.bf16.msra.mxu0 %v273
  %802 = vmatmul.bf16.gmra.mxu0 %v792
  %v803 = vpop.f32.mrf.mxu0
  %v804 = vadd.f32 0.0, %v803
  %v805 = vpop.f32.mrf.mxu0
  %806 = vdwg.mxu0
  %807 = vmatpush.bf16.msra.mxu0 0
  %808 = vmatpush.bf16.msra.mxu0 0
  %809 = vmatpush.bf16.msra.mxu0 0
  %810 = vmatpush.bf16.msra.mxu0 0
  %811 = vmatpush.bf16.msra.mxu0 %v280
  %812 = vmatpush.bf16.msra.mxu0 %v278
  %813 = vmatpush.bf16.msra.mxu0 %v276
  %814 = vmatpush.bf16.msra.mxu0 %v274
  %815 = vmatmul.bf16.gmra.mxu0 %v792
  %v816 = vpop.f32.mrf.mxu0
  %v817 = vadd.f32 0.0, %v816
  %v818 = vpop.f32.mrf.mxu0
  %819 = vdwg.mxu0
  %v820 = vadd.f32 %v206, %v804
  %v821 = vxor.u32 %v820, 2147483648
  %v822 = vmul.f32 %v821, 1.442695
  %v823 = vpow.pop %v822
  %v824 = vadd.f32 %v823, 1.0
  %v825 = vrcp.pop %v824
  %v826 = vmul.f32 %v824, %v825
  %v827 = vsub.f32 1.0, %v826
  %v828 = vmul.f32 %v825, %v827
  %v829 = vadd.f32 %v825, %v828
  %vm830 = vweird.f32 %v824
  %vm831 = vweird.f32 %v825
  %vm832 = vmor %vm830, %vm831
  %v833 = vsel %vm832, %v825, %v829
  %v834 = vand.u32 2147483647, %v824
  %vm835 = vcmp.eq.f32.partialorder %v834, 8.507059e+37
  %v836 = vand.u32 %v824, 2147483648
  %v837 = vor.u32 1.1754944e-38, %v836
  %v838 = vsel %vm835, %v837, %v833
  %v839 = vmul.f32 1.0, %v838
  %v840 = vadd.f32 %v817, %v247
  %v841 = vmul.f32 %v839, %v840
  %v842 = vadd.f32 %v235, %v841
  %v843 = vtanh.pop %v842
  %v844 = vsub.f32 1.0, %v839
  %846 = vrot.lane.b32.xlu0 %v843, 64
  %v847 = vpop.permute.xlu0 %846
  %v849 = vmul.f32 %v844, %v847
  %v850 = vmul.f32 %v839, %v780
  %v851 = vadd.f32 %v849, %v850
  %852 = vst.msk [vmem:[%s7 + $0x18] sm:$0xff] %vm424, %v851
  %854 = vrot.lane.b32.xlu0 %v851, 64
  %v855 = vpop.permute.xlu0 %854
  %857 = vst.msk [vmem:[%s7] sm:$0xff] %vm430, %v855
  %858 = vst.msk [vmem:[%s8] sm:$0xff] %vm355, %v855
  %859 = vrot.lane.b32.xlu0 %v851, 32
  %v860 = vpop.permute.xlu0 %859
  %s862 = scalar_lea.vmem %s8, 8
  %863 = vst.msk [vmem:[%s862] sm:$0xff] %vm355, %v860
  %864 = vrot.lane.b32.xlu0 %v851, 96
  %v865 = vpop.permute.xlu0 %864
  %v867 = vadd.f32 %v851, %v865
  %v868 = vmul.f32 %v867, 0.5
  %v869 = vpack.c.bf16 %v868, %v868
  %v870 = vld [vmem:[%s4] sm:$0xf]
  %v871 = vld [vmem:[%s4 + $0x4] sm:$0xf]
  %v872 = vld [vmem:[%s4 + $0x8] sm:$0xf]
  %v873 = vld [vmem:[%s4 + $0xc] sm:$0xf]
  %v874 = vld [vmem:[%s5] sm:$0x1]
  %v876 = vperm.slane %v874, 0
  %879 = vrot.lane.b32.xlu0 %v869, 64
  %v880 = vpop.permute.xlu0 %879
  %v885 = vunpack.c.l.b16 %v870
  %v886 = vunpack.c.l.b16 %v871
  %v887 = vunpack.c.l.b16 %v872
  %v888 = vunpack.c.l.b16 %v873
  %v889 = vpack.c.b16 %v886, %v885
  %v890 = vpack.c.b16 %v888, %v887
  %v894 = vsel %vm355, %v880, 0
  %896 = vmatpush.bf16.msra.mxu0 0
  %897 = vmatpush.bf16.msra.mxu0 0
  %898 = vmatpush.bf16.msra.mxu0 0
  %899 = vmatpush.bf16.msra.mxu0 0
  %900 = vmatpush.bf16.msra.mxu0 0
  %901 = vmatpush.bf16.msra.mxu0 0
  %902 = vmatpush.bf16.msra.mxu0 %v890
  %903 = vmatpush.bf16.msra.mxu0 %v889
  %904 = vmatmul.bf16.gmra.mxu0 %v894
  %v905 = vpop.f32.mrf.mxu0
  %v906 = vadd.f32 %v876, %v905
  %v907 = vpop.f32.mrf.mxu0
  %908 = vdwg.mxu0
  %vm909 = vcmask 64512
  %910 = vst.msk [vmem:[%s6] sm:$0xff] %vm909, %v906
  // Predicated region
  $region26: #{gru_net_forward.1} parent=0 // pred_check
    _
  $region27: #{gru_net_forward.1} parent=0 // pred_check_branch
    %912 = sbr.rel (0) target = $region29
  $region28: #{gru_net_forward.1} parent=0 // pred_region
    _
  $region29: #{gru_net_forward.1} parent=0 // pred_fallthru
    _
  // Predicated region
  $region30: #{gru_net_forward.1} parent=0 // pred_check
    _
  $region31: #{gru_net_forward.1} parent=0 // pred_check_branch
    %914 = sbr.rel (0) target = $region33
  $region32: #{gru_net_forward.1} parent=0 // pred_region
    _
  $region33: #{gru_net_forward.1} parent=0 // pred_fallthru
    _
  // Predicated region
  $region34: #{gru_net_forward.1} parent=0 // pred_check
    _
  $region35: #{gru_net_forward.1} parent=0 // pred_check_branch
    %916 = sbr.rel (0) target = $region37
  $region36: #{gru_net_forward.1} parent=0 // pred_region
    _
  $region37: #{gru_net_forward.1} parent=0 // pred_fallthru
    _
  // Predicated region
  $region38: #{gru_net_forward.1} parent=0 // pred_check
    _
  $region39: #{gru_net_forward.1} parent=0 // pred_check_branch
    %918 = sbr.rel (0) target = $region41
  $region40: #{gru_net_forward.1} parent=0 // pred_region
    _
  $region41: #{gru_net_forward.1} parent=0 // pred_fallthru
    _
  // Predicated region
  $region42: #{gru_net_forward.1} parent=0 // pred_check
    _
  $region43: #{gru_net_forward.1} parent=0 // pred_check_branch
    %920 = sbr.rel (0) target = $region45
  $region44: #{gru_net_forward.1} parent=0 // pred_region
    _
  $region45: #{gru_net_forward.1} parent=0 // pred_fallthru
    _
  // Predicated region
  $region46: #{gru_net_forward.1} parent=0 // pred_check
    _
  $region47: #{gru_net_forward.1} parent=0 // pred_check_branch
    %922 = sbr.rel (0) target = $region49
  $region48: #{gru_net_forward.1} parent=0 // pred_region
    _
  $region49: #{gru_net_forward.1} parent=0 // pred_fallthru
    _

</llo_original>
